<compile_context>
chip_gen: v6e
topology: v6e:2x2x1
jax: 0.10.0
libtpu: 0.0.40
codegen_flags: <defaults>
</compile_context>

<pallas_src>
import numpy as np
import jax
import jax.numpy as jnp
from jax.experimental import pallas as pl
from jax.experimental.pallas import tpu as pltpu

BN_EPS = 1e-5
LN_EPS = 1e-5


def _round_up(v, m):
    return (v + m - 1) // m * m


def cont_embedding_kernel(x_ref, w_ih_ref, w_hh_ref, b_gx_ref, b_hn_ref,
                          bn_g_ref, bn_b_ref, ln_g_ref, ln_b_ref, o_ref):
    T, Np, D = x_ref.shape          # T = GRU time (batch rows), Np = padded seq_len-1
    H = o_ref.shape[-1]             # embed_dim
    inv_td = 1.0 / (T * D)

    # ---- BatchNorm1d(seq_len-1): two-pass per-channel stats over axes (0, 2),
    #      affine folded into the scale/shift feeding the input projection. ----
    x = x_ref[...]                                                    # (T, Np, D)
    mean = jnp.sum(jnp.sum(x, axis=2, keepdims=True),
                   axis=0, keepdims=True) * inv_td                    # (1, Np, 1)
    d = x - mean
    var = jnp.sum(jnp.sum(d * d, axis=2, keepdims=True),
                  axis=0, keepdims=True) * inv_td                     # (1, Np, 1)
    a = bn_g_ref[...] * jax.lax.rsqrt(var + BN_EPS)                   # (1, Np, 1)
    xn = d * a + bn_b_ref[...]                                        # (T, Np, D), vregs

    # ---- Hoisted GRU input projection for all T steps: one bf16 MXU matmul, f32 acc.
    #      b_gx already carries b_ih plus the r/z slices of b_hh.  Np is padded to exactly
    #      8 sublanes, so the (T, Np, D) -> (T*Np, D) collapse is layout-preserving and gx
    #      never leaves vregs (no VMEM scratch round-trip). ----
    xn2 = xn.reshape(T * Np, D).astype(jnp.bfloat16)
    gx = jnp.dot(xn2, w_ih_ref[...],
                 preferred_element_type=jnp.float32) + b_gx_ref[...]  # (T*Np, Gp) f32

    w_hh = w_hh_ref[...]            # (H, Gp) bf16, resident across the recurrence
    b_hn = b_hn_ref[...]            # (1, H) f32, n-gate recurrent bias

    # ---- GRU recurrence: only the gh matmul + gate math on the serial chain.  Static
    #      Python unroll (T is small/static); h stays vreg-resident. ----
    # TODO(synk): weight-stationary w_hh via pltpu.matmul_push_rhs/matmul_acc_lhs/matmul_pop
    # would drop the per-step RHS feed from the chain at production sizes.
    h = jnp.zeros((Np, H), dtype=jnp.float32)
    hs = []
    for t in range(T):
        gxt = gx[t * Np:(t + 1) * Np]                                 # vreg-aligned slice
        gh = jnp.dot(h.astype(jnp.bfloat16), w_hh,
                     preferred_element_type=jnp.float32)              # (Np, Gp)
        r = jax.nn.sigmoid(gxt[:, 0:H] + gh[:, 0:H])
        z = jax.nn.sigmoid(gxt[:, H:2 * H] + gh[:, H:2 * H])
        n = jnp.tanh(gxt[:, 2 * H:3 * H] + r * (gh[:, 2 * H:3 * H] + b_hn))
        h = (1.0 - z) * n + z * h
        hs.append(h)

    # ---- LayerNorm(embed_dim): one vectorized pass + one dense store after the loop. ----
    # TODO(synk): H=32 leaves this store lane-masked (32/128 lanes); at production shapes use
    # an embed_dim multiple of 128 or present a lane-dense output slab wrapper-side.
    hsa = jnp.stack(hs, axis=0)                                       # (T, Np, H)
    mu = jnp.mean(hsa, axis=-1, keepdims=True)
    dd = hsa - mu
    vv = jnp.mean(dd * dd, axis=-1, keepdims=True)
    o_ref[...] = dd * jax.lax.rsqrt(vv + LN_EPS) * ln_g_ref[...] + ln_b_ref[...]


def cont_embedding(x, params):
    T, N, D = x.shape
    H = params["w_hh"].shape[0]
    G = 3 * H
    Np = _round_up(N, 8)          # sublane-align the GRU-batch / BN-channel axis
    Gp = _round_up(G, 128)        # lane-align the stacked [r|z|n] gate axis

    # Host-side padding (padded rows/columns are zero and are sliced off / ignored).
    x_p = jnp.pad(x, ((0, 0), (0, Np - N), (0, 0)))
    # MXU operands in bf16 (f32 accumulation in-kernel); biases / affine params stay f32.
    w_ih = jnp.pad(params["w_ih"], ((0, 0), (0, Gp - G))).astype(jnp.bfloat16)
    w_hh = jnp.pad(params["w_hh"], ((0, 0), (0, Gp - G))).astype(jnp.bfloat16)
    b_ih = jnp.asarray(params["b_ih"], jnp.float32).reshape(1, G)
    b_hh = jnp.asarray(params["b_hh"], jnp.float32).reshape(1, G)
    # Fold the r/z part of b_hh into the hoisted projection bias; keep only the n-gate
    # recurrent bias on the per-step chain.
    b_gx = jnp.pad(b_ih.at[:, :2 * H].add(b_hh[:, :2 * H]), ((0, 0), (0, Gp - G)))
    b_hn = b_hh[:, 2 * H:]                                            # (1, H)
    bn_g = jnp.pad(params["bn_g"].reshape(1, N, 1), ((0, 0), (0, Np - N), (0, 0)))
    bn_b = jnp.pad(params["bn_b"].reshape(1, N, 1), ((0, 0), (0, Np - N), (0, 0)))
    ln_g = params["ln_g"].reshape(1, 1, H)
    ln_b = params["ln_b"].reshape(1, 1, H)

    full3 = lambda shp: pl.BlockSpec(shp, lambda i: (0, 0, 0))
    full2 = lambda shp: pl.BlockSpec(shp, lambda i: (0, 0))

    out = pl.pallas_call(
        cont_embedding_kernel,
        out_shape=jax.ShapeDtypeStruct((T, Np, H), jnp.float32),
        grid=(1,),
        # TODO(synk): at production shapes, tile the independent Np axis over a "parallel"
        # grid dimension (Np tile ~256 on v6e, ~128 per TC on v7x/v5e, weights kept resident
        # via constant index_maps) and spill gx back to a VMEM scratch; at these toy sizes a
        # single fully vreg-resident block is optimal.
        in_specs=[
            full3((T, Np, D)),         # x (padded)
            full2((D, Gp)),            # w_ih (transposed PyTorch weight_ih_l0, gate-padded, bf16)
            full2((H, Gp)),            # w_hh (transposed PyTorch weight_hh_l0, gate-padded, bf16)
            full2((1, Gp)),            # b_ih + [b_hh_r | b_hh_z | 0]
            full2((1, H)),             # b_hh_n
            full3((1, Np, 1)),         # bn gamma
            full3((1, Np, 1)),         # bn beta
            full3((1, 1, H)),          # ln gamma
            full3((1, 1, H)),          # ln beta
        ],
        out_specs=full3((T, Np, H)),
        compiler_params=pltpu.CompilerParams(dimension_semantics=("arbitrary",)),
    )(x_p, w_ih, w_hh, b_gx, b_hn, bn_g, bn_b, ln_g, ln_b)

    return out[:, :N, :]


def cont_embedding_ref(x, params):
    """Pure-JAX reference mirroring the PyTorch forward."""
    H = params["w_hh"].shape[0]
    mean = x.mean(axis=(0, 2), keepdims=True)
    var = jnp.square(x - mean).mean(axis=(0, 2), keepdims=True)
    xn = (x - mean) / jnp.sqrt(var + BN_EPS) * params["bn_g"] + params["bn_b"]

    def step(h, xt):
        gx = xt @ params["w_ih"] + params["b_ih"]
        gh = h @ params["w_hh"] + params["b_hh"]
        r = jax.nn.sigmoid(gx[:, :H] + gh[:, :H])
        z = jax.nn.sigmoid(gx[:, H:2 * H] + gh[:, H:2 * H])
        n = jnp.tanh(gx[:, 2 * H:] + r * gh[:, 2 * H:])
        h_new = (1.0 - z) * n + z * h
        return h_new, h_new

    h0 = jnp.zeros((x.shape[1], H), jnp.float32)
    _, ys = jax.lax.scan(step, h0, xn)
    mu = ys.mean(-1, keepdims=True)
    vv = jnp.square(ys - mu).mean(-1, keepdims=True)
    return (ys - mu) / jnp.sqrt(vv + LN_EPS) * params["ln_g"] + params["ln_b"]


if __name__ == "__main__":
    B, SEQ_LEN, INPUT_DIM, EMBED_DIM = 8, 8, 16, 32
    S = SEQ_LEN - 1
    D, H = INPUT_DIM, EMBED_DIM

    key = jax.random.PRNGKey(0)
    kx, *kp = jax.random.split(key, 10)
    k = 1.0 / np.sqrt(H)
    u = lambda kk, shp: jax.random.uniform(kk, shp, jnp.float32, -k, k)

    # PyTorch nn.GRU parameter layout: weight_ih_l0 (3H, D), gates stacked [r | z | n].
    w_ih_pt = u(kp[0], (3 * H, D))
    w_hh_pt = u(kp[1], (3 * H, H))
    b_ih_pt = u(kp[2], (3 * H,))
    b_hh_pt = u(kp[3], (3 * H,))

    params = dict(
        w_ih=w_ih_pt.T,                         # (D, 3H)
        w_hh=w_hh_pt.T,                         # (H, 3H)
        b_ih=b_ih_pt.reshape(1, 3 * H),
        b_hh=b_hh_pt.reshape(1, 3 * H),
        bn_g=(1.0 + 0.1 * jax.random.normal(kp[4], (S,), jnp.float32)).reshape(1, S, 1),
        bn_b=(0.1 * jax.random.normal(kp[5], (S,), jnp.float32)).reshape(1, S, 1),
        ln_g=(1.0 + 0.1 * jax.random.normal(kp[6], (H,), jnp.float32)).reshape(1, H),
        ln_b=(0.1 * jax.random.normal(kp[7], (H,), jnp.float32)).reshape(1, H),
    )

    x = jax.random.normal(kx, (B, S, D), jnp.float32)

    out = jax.block_until_ready(cont_embedding(x, params))
    ref = jax.block_until_ready(cont_embedding_ref(x, params))
    np.testing.assert_allclose(np.asarray(out), np.asarray(ref), rtol=2e-2, atol=2e-2)
    print("KERNEL_OK")
</pallas_src>

<mosaic_0001>
module attributes {stable_mosaic.version = 11 : i64} {
  func.func @cont_embedding_kernel(%arg0: i32, %arg1: memref<8x8x16xf32, #tpu.memory_space<vmem>>, %arg2: memref<16x128xbf16, #tpu.memory_space<vmem>>, %arg3: memref<32x128xbf16, #tpu.memory_space<vmem>>, %arg4: memref<1x128xf32, #tpu.memory_space<vmem>>, %arg5: memref<1x32xf32, #tpu.memory_space<vmem>>, %arg6: memref<1x8x1xf32, #tpu.memory_space<vmem>>, %arg7: memref<1x8x1xf32, #tpu.memory_space<vmem>>, %arg8: memref<1x1x32xf32, #tpu.memory_space<vmem>>, %arg9: memref<1x1x32xf32, #tpu.memory_space<vmem>>, %arg10: memref<8x8x32xf32, #tpu.memory_space<vmem>>) attributes {dimension_semantics = [#tpu.dimension_semantics<arbitrary>], iteration_bounds = array<i64: 1>, scalar_prefetch = 0 : i64, scratch_operands = 0 : i64, tpu.core_type = #tpu.core_type<tc>, window_params = [{pipeline_mode = #tpu.pipeline_mode<synchronous>, transform_indices = @transform_0, window_bounds = array<i64: 8, 8, 16>}, {pipeline_mode = #tpu.pipeline_mode<synchronous>, transform_indices = @transform_1, window_bounds = array<i64: 16, 128>}, {pipeline_mode = #tpu.pipeline_mode<synchronous>, transform_indices = @transform_2, window_bounds = array<i64: 32, 128>}, {pipeline_mode = #tpu.pipeline_mode<synchronous>, transform_indices = @transform_3, window_bounds = array<i64: 1, 128>}, {pipeline_mode = #tpu.pipeline_mode<synchronous>, transform_indices = @transform_4, window_bounds = array<i64: 1, 32>}, {pipeline_mode = #tpu.pipeline_mode<synchronous>, transform_indices = @transform_5, window_bounds = array<i64: 1, 8, 1>}, {pipeline_mode = #tpu.pipeline_mode<synchronous>, transform_indices = @transform_6, window_bounds = array<i64: 1, 8, 1>}, {pipeline_mode = #tpu.pipeline_mode<synchronous>, transform_indices = @transform_7, window_bounds = array<i64: 1, 1, 32>}, {pipeline_mode = #tpu.pipeline_mode<synchronous>, transform_indices = @transform_8, window_bounds = array<i64: 1, 1, 32>}, {pipeline_mode = #tpu.pipeline_mode<synchronous>, transform_indices = @transform_9, window_bounds = array<i64: 8, 8, 32>}]} {
    %c0 = arith.constant 0 : index
    %c0_0 = arith.constant 0 : index
    %c0_1 = arith.constant 0 : index
    %0 = vector.load %arg1[%c0, %c0_0, %c0_1] : memref<8x8x16xf32, #tpu.memory_space<vmem>>, vector<8x8x16xf32>
    %cst = arith.constant dense<0.000000e+00> : vector<8x8xf32>
    %1 = vector.multi_reduction <add>, %0, %cst [2] : vector<8x8x16xf32> to vector<8x8xf32>
    %2 = vector.shape_cast %1 : vector<8x8xf32> to vector<8x8x1xf32>
    %cst_2 = arith.constant dense<0.000000e+00> : vector<8x1xf32>
    %3 = vector.multi_reduction <add>, %2, %cst_2 [0] : vector<8x8x1xf32> to vector<8x1xf32>
    %4 = vector.shape_cast %3 : vector<8x1xf32> to vector<1x8x1xf32>
    %cst_3 = arith.constant 7.812500e-03 : f32
    %5 = vector.broadcast %cst_3 : f32 to vector<1x8x1xf32>
    %6 = arith.mulf %4, %5 : vector<1x8x1xf32>
    %7 = vector.broadcast %6 : vector<1x8x1xf32> to vector<8x8x16xf32>
    %8 = arith.subf %0, %7 : vector<8x8x16xf32>
    %9 = arith.mulf %8, %8 : vector<8x8x16xf32>
    %cst_4 = arith.constant dense<0.000000e+00> : vector<8x8xf32>
    %10 = vector.multi_reduction <add>, %9, %cst_4 [2] : vector<8x8x16xf32> to vector<8x8xf32>
    %11 = vector.shape_cast %10 : vector<8x8xf32> to vector<8x8x1xf32>
    %cst_5 = arith.constant dense<0.000000e+00> : vector<8x1xf32>
    %12 = vector.multi_reduction <add>, %11, %cst_5 [0] : vector<8x8x1xf32> to vector<8x1xf32>
    %13 = vector.shape_cast %12 : vector<8x1xf32> to vector<1x8x1xf32>
    %cst_6 = arith.constant 7.812500e-03 : f32
    %14 = vector.broadcast %cst_6 : f32 to vector<1x8x1xf32>
    %15 = arith.mulf %13, %14 : vector<1x8x1xf32>
    %c0_7 = arith.constant 0 : index
    %c0_8 = arith.constant 0 : index
    %c0_9 = arith.constant 0 : index
    %16 = vector.load %arg6[%c0_7, %c0_8, %c0_9] : memref<1x8x1xf32, #tpu.memory_space<vmem>>, vector<1x8x1xf32>
    %cst_10 = arith.constant 9.99999974E-6 : f32
    %17 = vector.broadcast %cst_10 : f32 to vector<1x8x1xf32>
    %18 = arith.addf %15, %17 : vector<1x8x1xf32>
    %19 = math.rsqrt %18 : vector<1x8x1xf32>
    %20 = arith.mulf %16, %19 : vector<1x8x1xf32>
    %21 = vector.broadcast %20 : vector<1x8x1xf32> to vector<8x8x16xf32>
    %22 = arith.mulf %8, %21 : vector<8x8x16xf32>
    %c0_11 = arith.constant 0 : index
    %c0_12 = arith.constant 0 : index
    %c0_13 = arith.constant 0 : index
    %23 = vector.load %arg7[%c0_11, %c0_12, %c0_13] : memref<1x8x1xf32, #tpu.memory_space<vmem>>, vector<1x8x1xf32>
    %24 = vector.broadcast %23 : vector<1x8x1xf32> to vector<8x8x16xf32>
    %25 = arith.addf %22, %24 : vector<8x8x16xf32>
    %26 = vector.shape_cast %25 : vector<8x8x16xf32> to vector<64x16xf32>
    %27 = arith.truncf %26 : vector<64x16xf32> to vector<64x16xbf16>
    %c0_14 = arith.constant 0 : index
    %c0_15 = arith.constant 0 : index
    %28 = vector.load %arg2[%c0_14, %c0_15] : memref<16x128xbf16, #tpu.memory_space<vmem>>, vector<16x128xbf16>
    %cst_16 = arith.constant dense<0.000000e+00> : vector<64x128xf32>
    %29 = tpu.matmul %27, %28, %cst_16 {dimension_numbers = #tpu.dot_dimension_numbers<[1], [0], [0], [1], [0, 0, 1, 1], [], []>} : vector<64x16xbf16>, vector<16x128xbf16>, vector<64x128xf32> -> vector<64x128xf32>
    %c0_17 = arith.constant 0 : index
    %c0_18 = arith.constant 0 : index
    %30 = vector.load %arg4[%c0_17, %c0_18] : memref<1x128xf32, #tpu.memory_space<vmem>>, vector<1x128xf32>
    %31 = vector.broadcast %30 : vector<1x128xf32> to vector<64x128xf32>
    %32 = arith.addf %29, %31 : vector<64x128xf32>
    %c0_19 = arith.constant 0 : index
    %c0_20 = arith.constant 0 : index
    %33 = vector.load %arg3[%c0_19, %c0_20] : memref<32x128xbf16, #tpu.memory_space<vmem>>, vector<32x128xbf16>
    %c0_21 = arith.constant 0 : index
    %c0_22 = arith.constant 0 : index
    %34 = vector.load %arg5[%c0_21, %c0_22] : memref<1x32xf32, #tpu.memory_space<vmem>>, vector<1x32xf32>
    %cst_23 = arith.constant 0.000000e+00 : f32
    %35 = vector.broadcast %cst_23 : f32 to vector<8x32xf32>
    %36 = vector.extract_strided_slice %32 {offsets = [0, 0], sizes = [8, 128], strides = [1, 1]} : vector<64x128xf32> to vector<8x128xf32>
    %37 = arith.truncf %35 : vector<8x32xf32> to vector<8x32xbf16>
    %cst_24 = arith.constant dense<0.000000e+00> : vector<8x128xf32>
    %38 = tpu.matmul %37, %33, %cst_24 {dimension_numbers = #tpu.dot_dimension_numbers<[1], [0], [0], [1], [0, 0, 1, 1], [], []>} : vector<8x32xbf16>, vector<32x128xbf16>, vector<8x128xf32> -> vector<8x128xf32>
    %39 = vector.extract_strided_slice %36 {offsets = [0, 0], sizes = [8, 32], strides = [1, 1]} : vector<8x128xf32> to vector<8x32xf32>
    %40 = vector.extract_strided_slice %38 {offsets = [0, 0], sizes = [8, 32], strides = [1, 1]} : vector<8x128xf32> to vector<8x32xf32>
    %41 = arith.addf %39, %40 : vector<8x32xf32>
    %42 = arith.negf %41 : vector<8x32xf32>
    %43 = math.exp %42 : vector<8x32xf32>
    %cst_25 = arith.constant 1.000000e+00 : f32
    %44 = vector.broadcast %cst_25 : f32 to vector<8x32xf32>
    %45 = arith.addf %44, %43 : vector<8x32xf32>
    %46 = arith.divf %44, %45 : vector<8x32xf32>
    %47 = vector.extract_strided_slice %36 {offsets = [0, 32], sizes = [8, 32], strides = [1, 1]} : vector<8x128xf32> to vector<8x32xf32>
    %48 = vector.extract_strided_slice %38 {offsets = [0, 32], sizes = [8, 32], strides = [1, 1]} : vector<8x128xf32> to vector<8x32xf32>
    %49 = arith.addf %47, %48 : vector<8x32xf32>
    %50 = arith.negf %49 : vector<8x32xf32>
    %51 = math.exp %50 : vector<8x32xf32>
    %cst_26 = arith.constant 1.000000e+00 : f32
    %52 = vector.broadcast %cst_26 : f32 to vector<8x32xf32>
    %53 = arith.addf %52, %51 : vector<8x32xf32>
    %54 = arith.divf %52, %53 : vector<8x32xf32>
    %55 = vector.extract_strided_slice %36 {offsets = [0, 64], sizes = [8, 32], strides = [1, 1]} : vector<8x128xf32> to vector<8x32xf32>
    %56 = vector.extract_strided_slice %38 {offsets = [0, 64], sizes = [8, 32], strides = [1, 1]} : vector<8x128xf32> to vector<8x32xf32>
    %57 = vector.broadcast %34 : vector<1x32xf32> to vector<8x32xf32>
    %58 = arith.addf %56, %57 : vector<8x32xf32>
    %59 = arith.mulf %46, %58 : vector<8x32xf32>
    %60 = arith.addf %55, %59 : vector<8x32xf32>
    %61 = math.tanh %60 : vector<8x32xf32>
    %cst_27 = arith.constant 1.000000e+00 : f32
    %62 = vector.broadcast %cst_27 : f32 to vector<8x32xf32>
    %63 = arith.subf %62, %54 : vector<8x32xf32>
    %64 = arith.mulf %63, %61 : vector<8x32xf32>
    %65 = arith.mulf %54, %35 : vector<8x32xf32>
    %66 = arith.addf %64, %65 : vector<8x32xf32>
    %67 = vector.extract_strided_slice %32 {offsets = [8, 0], sizes = [8, 128], strides = [1, 1]} : vector<64x128xf32> to vector<8x128xf32>
    %68 = arith.truncf %66 : vector<8x32xf32> to vector<8x32xbf16>
    %cst_28 = arith.constant dense<0.000000e+00> : vector<8x128xf32>
    %69 = tpu.matmul %68, %33, %cst_28 {dimension_numbers = #tpu.dot_dimension_numbers<[1], [0], [0], [1], [0, 0, 1, 1], [], []>} : vector<8x32xbf16>, vector<32x128xbf16>, vector<8x128xf32> -> vector<8x128xf32>
    %70 = vector.extract_strided_slice %67 {offsets = [0, 0], sizes = [8, 32], strides = [1, 1]} : vector<8x128xf32> to vector<8x32xf32>
    %71 = vector.extract_strided_slice %69 {offsets = [0, 0], sizes = [8, 32], strides = [1, 1]} : vector<8x128xf32> to vector<8x32xf32>
    %72 = arith.addf %70, %71 : vector<8x32xf32>
    %73 = arith.negf %72 : vector<8x32xf32>
    %74 = math.exp %73 : vector<8x32xf32>
    %cst_29 = arith.constant 1.000000e+00 : f32
    %75 = vector.broadcast %cst_29 : f32 to vector<8x32xf32>
    %76 = arith.addf %75, %74 : vector<8x32xf32>
    %77 = arith.divf %75, %76 : vector<8x32xf32>
    %78 = vector.extract_strided_slice %67 {offsets = [0, 32], sizes = [8, 32], strides = [1, 1]} : vector<8x128xf32> to vector<8x32xf32>
    %79 = vector.extract_strided_slice %69 {offsets = [0, 32], sizes = [8, 32], strides = [1, 1]} : vector<8x128xf32> to vector<8x32xf32>
    %80 = arith.addf %78, %79 : vector<8x32xf32>
    %81 = arith.negf %80 : vector<8x32xf32>
    %82 = math.exp %81 : vector<8x32xf32>
    %cst_30 = arith.constant 1.000000e+00 : f32
    %83 = vector.broadcast %cst_30 : f32 to vector<8x32xf32>
    %84 = arith.addf %83, %82 : vector<8x32xf32>
    %85 = arith.divf %83, %84 : vector<8x32xf32>
    %86 = vector.extract_strided_slice %67 {offsets = [0, 64], sizes = [8, 32], strides = [1, 1]} : vector<8x128xf32> to vector<8x32xf32>
    %87 = vector.extract_strided_slice %69 {offsets = [0, 64], sizes = [8, 32], strides = [1, 1]} : vector<8x128xf32> to vector<8x32xf32>
    %88 = vector.broadcast %34 : vector<1x32xf32> to vector<8x32xf32>
    %89 = arith.addf %87, %88 : vector<8x32xf32>
    %90 = arith.mulf %77, %89 : vector<8x32xf32>
    %91 = arith.addf %86, %90 : vector<8x32xf32>
    %92 = math.tanh %91 : vector<8x32xf32>
    %cst_31 = arith.constant 1.000000e+00 : f32
    %93 = vector.broadcast %cst_31 : f32 to vector<8x32xf32>
    %94 = arith.subf %93, %85 : vector<8x32xf32>
    %95 = arith.mulf %94, %92 : vector<8x32xf32>
    %96 = arith.mulf %85, %66 : vector<8x32xf32>
    %97 = arith.addf %95, %96 : vector<8x32xf32>
    %98 = vector.extract_strided_slice %32 {offsets = [16, 0], sizes = [8, 128], strides = [1, 1]} : vector<64x128xf32> to vector<8x128xf32>
    %99 = arith.truncf %97 : vector<8x32xf32> to vector<8x32xbf16>
    %cst_32 = arith.constant dense<0.000000e+00> : vector<8x128xf32>
    %100 = tpu.matmul %99, %33, %cst_32 {dimension_numbers = #tpu.dot_dimension_numbers<[1], [0], [0], [1], [0, 0, 1, 1], [], []>} : vector<8x32xbf16>, vector<32x128xbf16>, vector<8x128xf32> -> vector<8x128xf32>
    %101 = vector.extract_strided_slice %98 {offsets = [0, 0], sizes = [8, 32], strides = [1, 1]} : vector<8x128xf32> to vector<8x32xf32>
    %102 = vector.extract_strided_slice %100 {offsets = [0, 0], sizes = [8, 32], strides = [1, 1]} : vector<8x128xf32> to vector<8x32xf32>
    %103 = arith.addf %101, %102 : vector<8x32xf32>
    %104 = arith.negf %103 : vector<8x32xf32>
    %105 = math.exp %104 : vector<8x32xf32>
    %cst_33 = arith.constant 1.000000e+00 : f32
    %106 = vector.broadcast %cst_33 : f32 to vector<8x32xf32>
    %107 = arith.addf %106, %105 : vector<8x32xf32>
    %108 = arith.divf %106, %107 : vector<8x32xf32>
    %109 = vector.extract_strided_slice %98 {offsets = [0, 32], sizes = [8, 32], strides = [1, 1]} : vector<8x128xf32> to vector<8x32xf32>
    %110 = vector.extract_strided_slice %100 {offsets = [0, 32], sizes = [8, 32], strides = [1, 1]} : vector<8x128xf32> to vector<8x32xf32>
    %111 = arith.addf %109, %110 : vector<8x32xf32>
    %112 = arith.negf %111 : vector<8x32xf32>
    %113 = math.exp %112 : vector<8x32xf32>
    %cst_34 = arith.constant 1.000000e+00 : f32
    %114 = vector.broadcast %cst_34 : f32 to vector<8x32xf32>
    %115 = arith.addf %114, %113 : vector<8x32xf32>
    %116 = arith.divf %114, %115 : vector<8x32xf32>
    %117 = vector.extract_strided_slice %98 {offsets = [0, 64], sizes = [8, 32], strides = [1, 1]} : vector<8x128xf32> to vector<8x32xf32>
    %118 = vector.extract_strided_slice %100 {offsets = [0, 64], sizes = [8, 32], strides = [1, 1]} : vector<8x128xf32> to vector<8x32xf32>
    %119 = vector.broadcast %34 : vector<1x32xf32> to vector<8x32xf32>
    %120 = arith.addf %118, %119 : vector<8x32xf32>
    %121 = arith.mulf %108, %120 : vector<8x32xf32>
    %122 = arith.addf %117, %121 : vector<8x32xf32>
    %123 = math.tanh %122 : vector<8x32xf32>
    %cst_35 = arith.constant 1.000000e+00 : f32
    %124 = vector.broadcast %cst_35 : f32 to vector<8x32xf32>
    %125 = arith.subf %124, %116 : vector<8x32xf32>
    %126 = arith.mulf %125, %123 : vector<8x32xf32>
    %127 = arith.mulf %116, %97 : vector<8x32xf32>
    %128 = arith.addf %126, %127 : vector<8x32xf32>
    %129 = vector.extract_strided_slice %32 {offsets = [24, 0], sizes = [8, 128], strides = [1, 1]} : vector<64x128xf32> to vector<8x128xf32>
    %130 = arith.truncf %128 : vector<8x32xf32> to vector<8x32xbf16>
    %cst_36 = arith.constant dense<0.000000e+00> : vector<8x128xf32>
    %131 = tpu.matmul %130, %33, %cst_36 {dimension_numbers = #tpu.dot_dimension_numbers<[1], [0], [0], [1], [0, 0, 1, 1], [], []>} : vector<8x32xbf16>, vector<32x128xbf16>, vector<8x128xf32> -> vector<8x128xf32>
    %132 = vector.extract_strided_slice %129 {offsets = [0, 0], sizes = [8, 32], strides = [1, 1]} : vector<8x128xf32> to vector<8x32xf32>
    %133 = vector.extract_strided_slice %131 {offsets = [0, 0], sizes = [8, 32], strides = [1, 1]} : vector<8x128xf32> to vector<8x32xf32>
    %134 = arith.addf %132, %133 : vector<8x32xf32>
    %135 = arith.negf %134 : vector<8x32xf32>
    %136 = math.exp %135 : vector<8x32xf32>
    %cst_37 = arith.constant 1.000000e+00 : f32
    %137 = vector.broadcast %cst_37 : f32 to vector<8x32xf32>
    %138 = arith.addf %137, %136 : vector<8x32xf32>
    %139 = arith.divf %137, %138 : vector<8x32xf32>
    %140 = vector.extract_strided_slice %129 {offsets = [0, 32], sizes = [8, 32], strides = [1, 1]} : vector<8x128xf32> to vector<8x32xf32>
    %141 = vector.extract_strided_slice %131 {offsets = [0, 32], sizes = [8, 32], strides = [1, 1]} : vector<8x128xf32> to vector<8x32xf32>
    %142 = arith.addf %140, %141 : vector<8x32xf32>
    %143 = arith.negf %142 : vector<8x32xf32>
    %144 = math.exp %143 : vector<8x32xf32>
    %cst_38 = arith.constant 1.000000e+00 : f32
    %145 = vector.broadcast %cst_38 : f32 to vector<8x32xf32>
    %146 = arith.addf %145, %144 : vector<8x32xf32>
    %147 = arith.divf %145, %146 : vector<8x32xf32>
    %148 = vector.extract_strided_slice %129 {offsets = [0, 64], sizes = [8, 32], strides = [1, 1]} : vector<8x128xf32> to vector<8x32xf32>
    %149 = vector.extract_strided_slice %131 {offsets = [0, 64], sizes = [8, 32], strides = [1, 1]} : vector<8x128xf32> to vector<8x32xf32>
    %150 = vector.broadcast %34 : vector<1x32xf32> to vector<8x32xf32>
    %151 = arith.addf %149, %150 : vector<8x32xf32>
    %152 = arith.mulf %139, %151 : vector<8x32xf32>
    %153 = arith.addf %148, %152 : vector<8x32xf32>
    %154 = math.tanh %153 : vector<8x32xf32>
    %cst_39 = arith.constant 1.000000e+00 : f32
    %155 = vector.broadcast %cst_39 : f32 to vector<8x32xf32>
    %156 = arith.subf %155, %147 : vector<8x32xf32>
    %157 = arith.mulf %156, %154 : vector<8x32xf32>
    %158 = arith.mulf %147, %128 : vector<8x32xf32>
    %159 = arith.addf %157, %158 : vector<8x32xf32>
    %160 = vector.extract_strided_slice %32 {offsets = [32, 0], sizes = [8, 128], strides = [1, 1]} : vector<64x128xf32> to vector<8x128xf32>
    %161 = arith.truncf %159 : vector<8x32xf32> to vector<8x32xbf16>
    %cst_40 = arith.constant dense<0.000000e+00> : vector<8x128xf32>
    %162 = tpu.matmul %161, %33, %cst_40 {dimension_numbers = #tpu.dot_dimension_numbers<[1], [0], [0], [1], [0, 0, 1, 1], [], []>} : vector<8x32xbf16>, vector<32x128xbf16>, vector<8x128xf32> -> vector<8x128xf32>
    %163 = vector.extract_strided_slice %160 {offsets = [0, 0], sizes = [8, 32], strides = [1, 1]} : vector<8x128xf32> to vector<8x32xf32>
    %164 = vector.extract_strided_slice %162 {offsets = [0, 0], sizes = [8, 32], strides = [1, 1]} : vector<8x128xf32> to vector<8x32xf32>
    %165 = arith.addf %163, %164 : vector<8x32xf32>
    %166 = arith.negf %165 : vector<8x32xf32>
    %167 = math.exp %166 : vector<8x32xf32>
    %cst_41 = arith.constant 1.000000e+00 : f32
    %168 = vector.broadcast %cst_41 : f32 to vector<8x32xf32>
    %169 = arith.addf %168, %167 : vector<8x32xf32>
    %170 = arith.divf %168, %169 : vector<8x32xf32>
    %171 = vector.extract_strided_slice %160 {offsets = [0, 32], sizes = [8, 32], strides = [1, 1]} : vector<8x128xf32> to vector<8x32xf32>
    %172 = vector.extract_strided_slice %162 {offsets = [0, 32], sizes = [8, 32], strides = [1, 1]} : vector<8x128xf32> to vector<8x32xf32>
    %173 = arith.addf %171, %172 : vector<8x32xf32>
    %174 = arith.negf %173 : vector<8x32xf32>
    %175 = math.exp %174 : vector<8x32xf32>
    %cst_42 = arith.constant 1.000000e+00 : f32
    %176 = vector.broadcast %cst_42 : f32 to vector<8x32xf32>
    %177 = arith.addf %176, %175 : vector<8x32xf32>
    %178 = arith.divf %176, %177 : vector<8x32xf32>
    %179 = vector.extract_strided_slice %160 {offsets = [0, 64], sizes = [8, 32], strides = [1, 1]} : vector<8x128xf32> to vector<8x32xf32>
    %180 = vector.extract_strided_slice %162 {offsets = [0, 64], sizes = [8, 32], strides = [1, 1]} : vector<8x128xf32> to vector<8x32xf32>
    %181 = vector.broadcast %34 : vector<1x32xf32> to vector<8x32xf32>
    %182 = arith.addf %180, %181 : vector<8x32xf32>
    %183 = arith.mulf %170, %182 : vector<8x32xf32>
    %184 = arith.addf %179, %183 : vector<8x32xf32>
    %185 = math.tanh %184 : vector<8x32xf32>
    %cst_43 = arith.constant 1.000000e+00 : f32
    %186 = vector.broadcast %cst_43 : f32 to vector<8x32xf32>
    %187 = arith.subf %186, %178 : vector<8x32xf32>
    %188 = arith.mulf %187, %185 : vector<8x32xf32>
    %189 = arith.mulf %178, %159 : vector<8x32xf32>
    %190 = arith.addf %188, %189 : vector<8x32xf32>
    %191 = vector.extract_strided_slice %32 {offsets = [40, 0], sizes = [8, 128], strides = [1, 1]} : vector<64x128xf32> to vector<8x128xf32>
    %192 = arith.truncf %190 : vector<8x32xf32> to vector<8x32xbf16>
    %cst_44 = arith.constant dense<0.000000e+00> : vector<8x128xf32>
    %193 = tpu.matmul %192, %33, %cst_44 {dimension_numbers = #tpu.dot_dimension_numbers<[1], [0], [0], [1], [0, 0, 1, 1], [], []>} : vector<8x32xbf16>, vector<32x128xbf16>, vector<8x128xf32> -> vector<8x128xf32>
    %194 = vector.extract_strided_slice %191 {offsets = [0, 0], sizes = [8, 32], strides = [1, 1]} : vector<8x128xf32> to vector<8x32xf32>
    %195 = vector.extract_strided_slice %193 {offsets = [0, 0], sizes = [8, 32], strides = [1, 1]} : vector<8x128xf32> to vector<8x32xf32>
    %196 = arith.addf %194, %195 : vector<8x32xf32>
    %197 = arith.negf %196 : vector<8x32xf32>
    %198 = math.exp %197 : vector<8x32xf32>
    %cst_45 = arith.constant 1.000000e+00 : f32
    %199 = vector.broadcast %cst_45 : f32 to vector<8x32xf32>
    %200 = arith.addf %199, %198 : vector<8x32xf32>
    %201 = arith.divf %199, %200 : vector<8x32xf32>
    %202 = vector.extract_strided_slice %191 {offsets = [0, 32], sizes = [8, 32], strides = [1, 1]} : vector<8x128xf32> to vector<8x32xf32>
    %203 = vector.extract_strided_slice %193 {offsets = [0, 32], sizes = [8, 32], strides = [1, 1]} : vector<8x128xf32> to vector<8x32xf32>
    %204 = arith.addf %202, %203 : vector<8x32xf32>
    %205 = arith.negf %204 : vector<8x32xf32>
    %206 = math.exp %205 : vector<8x32xf32>
    %cst_46 = arith.constant 1.000000e+00 : f32
    %207 = vector.broadcast %cst_46 : f32 to vector<8x32xf32>
    %208 = arith.addf %207, %206 : vector<8x32xf32>
    %209 = arith.divf %207, %208 : vector<8x32xf32>
    %210 = vector.extract_strided_slice %191 {offsets = [0, 64], sizes = [8, 32], strides = [1, 1]} : vector<8x128xf32> to vector<8x32xf32>
    %211 = vector.extract_strided_slice %193 {offsets = [0, 64], sizes = [8, 32], strides = [1, 1]} : vector<8x128xf32> to vector<8x32xf32>
    %212 = vector.broadcast %34 : vector<1x32xf32> to vector<8x32xf32>
    %213 = arith.addf %211, %212 : vector<8x32xf32>
    %214 = arith.mulf %201, %213 : vector<8x32xf32>
    %215 = arith.addf %210, %214 : vector<8x32xf32>
    %216 = math.tanh %215 : vector<8x32xf32>
    %cst_47 = arith.constant 1.000000e+00 : f32
    %217 = vector.broadcast %cst_47 : f32 to vector<8x32xf32>
    %218 = arith.subf %217, %209 : vector<8x32xf32>
    %219 = arith.mulf %218, %216 : vector<8x32xf32>
    %220 = arith.mulf %209, %190 : vector<8x32xf32>
    %221 = arith.addf %219, %220 : vector<8x32xf32>
    %222 = vector.extract_strided_slice %32 {offsets = [48, 0], sizes = [8, 128], strides = [1, 1]} : vector<64x128xf32> to vector<8x128xf32>
    %223 = arith.truncf %221 : vector<8x32xf32> to vector<8x32xbf16>
    %cst_48 = arith.constant dense<0.000000e+00> : vector<8x128xf32>
    %224 = tpu.matmul %223, %33, %cst_48 {dimension_numbers = #tpu.dot_dimension_numbers<[1], [0], [0], [1], [0, 0, 1, 1], [], []>} : vector<8x32xbf16>, vector<32x128xbf16>, vector<8x128xf32> -> vector<8x128xf32>
    %225 = vector.extract_strided_slice %222 {offsets = [0, 0], sizes = [8, 32], strides = [1, 1]} : vector<8x128xf32> to vector<8x32xf32>
    %226 = vector.extract_strided_slice %224 {offsets = [0, 0], sizes = [8, 32], strides = [1, 1]} : vector<8x128xf32> to vector<8x32xf32>
    %227 = arith.addf %225, %226 : vector<8x32xf32>
    %228 = arith.negf %227 : vector<8x32xf32>
    %229 = math.exp %228 : vector<8x32xf32>
    %cst_49 = arith.constant 1.000000e+00 : f32
    %230 = vector.broadcast %cst_49 : f32 to vector<8x32xf32>
    %231 = arith.addf %230, %229 : vector<8x32xf32>
    %232 = arith.divf %230, %231 : vector<8x32xf32>
    %233 = vector.extract_strided_slice %222 {offsets = [0, 32], sizes = [8, 32], strides = [1, 1]} : vector<8x128xf32> to vector<8x32xf32>
    %234 = vector.extract_strided_slice %224 {offsets = [0, 32], sizes = [8, 32], strides = [1, 1]} : vector<8x128xf32> to vector<8x32xf32>
    %235 = arith.addf %233, %234 : vector<8x32xf32>
    %236 = arith.negf %235 : vector<8x32xf32>
    %237 = math.exp %236 : vector<8x32xf32>
    %cst_50 = arith.constant 1.000000e+00 : f32
    %238 = vector.broadcast %cst_50 : f32 to vector<8x32xf32>
    %239 = arith.addf %238, %237 : vector<8x32xf32>
    %240 = arith.divf %238, %239 : vector<8x32xf32>
    %241 = vector.extract_strided_slice %222 {offsets = [0, 64], sizes = [8, 32], strides = [1, 1]} : vector<8x128xf32> to vector<8x32xf32>
    %242 = vector.extract_strided_slice %224 {offsets = [0, 64], sizes = [8, 32], strides = [1, 1]} : vector<8x128xf32> to vector<8x32xf32>
    %243 = vector.broadcast %34 : vector<1x32xf32> to vector<8x32xf32>
    %244 = arith.addf %242, %243 : vector<8x32xf32>
    %245 = arith.mulf %232, %244 : vector<8x32xf32>
    %246 = arith.addf %241, %245 : vector<8x32xf32>
    %247 = math.tanh %246 : vector<8x32xf32>
    %cst_51 = arith.constant 1.000000e+00 : f32
    %248 = vector.broadcast %cst_51 : f32 to vector<8x32xf32>
    %249 = arith.subf %248, %240 : vector<8x32xf32>
    %250 = arith.mulf %249, %247 : vector<8x32xf32>
    %251 = arith.mulf %240, %221 : vector<8x32xf32>
    %252 = arith.addf %250, %251 : vector<8x32xf32>
    %253 = vector.extract_strided_slice %32 {offsets = [56, 0], sizes = [8, 128], strides = [1, 1]} : vector<64x128xf32> to vector<8x128xf32>
    %254 = arith.truncf %252 : vector<8x32xf32> to vector<8x32xbf16>
    %cst_52 = arith.constant dense<0.000000e+00> : vector<8x128xf32>
    %255 = tpu.matmul %254, %33, %cst_52 {dimension_numbers = #tpu.dot_dimension_numbers<[1], [0], [0], [1], [0, 0, 1, 1], [], []>} : vector<8x32xbf16>, vector<32x128xbf16>, vector<8x128xf32> -> vector<8x128xf32>
    %256 = vector.extract_strided_slice %253 {offsets = [0, 0], sizes = [8, 32], strides = [1, 1]} : vector<8x128xf32> to vector<8x32xf32>
    %257 = vector.extract_strided_slice %255 {offsets = [0, 0], sizes = [8, 32], strides = [1, 1]} : vector<8x128xf32> to vector<8x32xf32>
    %258 = arith.addf %256, %257 : vector<8x32xf32>
    %259 = arith.negf %258 : vector<8x32xf32>
    %260 = math.exp %259 : vector<8x32xf32>
    %cst_53 = arith.constant 1.000000e+00 : f32
    %261 = vector.broadcast %cst_53 : f32 to vector<8x32xf32>
    %262 = arith.addf %261, %260 : vector<8x32xf32>
    %263 = arith.divf %261, %262 : vector<8x32xf32>
    %264 = vector.extract_strided_slice %253 {offsets = [0, 32], sizes = [8, 32], strides = [1, 1]} : vector<8x128xf32> to vector<8x32xf32>
    %265 = vector.extract_strided_slice %255 {offsets = [0, 32], sizes = [8, 32], strides = [1, 1]} : vector<8x128xf32> to vector<8x32xf32>
    %266 = arith.addf %264, %265 : vector<8x32xf32>
    %267 = arith.negf %266 : vector<8x32xf32>
    %268 = math.exp %267 : vector<8x32xf32>
    %cst_54 = arith.constant 1.000000e+00 : f32
    %269 = vector.broadcast %cst_54 : f32 to vector<8x32xf32>
    %270 = arith.addf %269, %268 : vector<8x32xf32>
    %271 = arith.divf %269, %270 : vector<8x32xf32>
    %272 = vector.extract_strided_slice %253 {offsets = [0, 64], sizes = [8, 32], strides = [1, 1]} : vector<8x128xf32> to vector<8x32xf32>
    %273 = vector.extract_strided_slice %255 {offsets = [0, 64], sizes = [8, 32], strides = [1, 1]} : vector<8x128xf32> to vector<8x32xf32>
    %274 = vector.broadcast %34 : vector<1x32xf32> to vector<8x32xf32>
    %275 = arith.addf %273, %274 : vector<8x32xf32>
    %276 = arith.mulf %263, %275 : vector<8x32xf32>
    %277 = arith.addf %272, %276 : vector<8x32xf32>
    %278 = math.tanh %277 : vector<8x32xf32>
    %cst_55 = arith.constant 1.000000e+00 : f32
    %279 = vector.broadcast %cst_55 : f32 to vector<8x32xf32>
    %280 = arith.subf %279, %271 : vector<8x32xf32>
    %281 = arith.mulf %280, %278 : vector<8x32xf32>
    %282 = arith.mulf %271, %252 : vector<8x32xf32>
    %283 = arith.addf %281, %282 : vector<8x32xf32>
    %284 = vector.shape_cast %66 : vector<8x32xf32> to vector<1x8x32xf32>
    %285 = vector.shape_cast %97 : vector<8x32xf32> to vector<1x8x32xf32>
    %286 = vector.shape_cast %128 : vector<8x32xf32> to vector<1x8x32xf32>
    %287 = vector.shape_cast %159 : vector<8x32xf32> to vector<1x8x32xf32>
    %288 = vector.shape_cast %190 : vector<8x32xf32> to vector<1x8x32xf32>
    %289 = vector.shape_cast %221 : vector<8x32xf32> to vector<1x8x32xf32>
    %290 = vector.shape_cast %252 : vector<8x32xf32> to vector<1x8x32xf32>
    %291 = vector.shape_cast %283 : vector<8x32xf32> to vector<1x8x32xf32>
    %292 = tpu.concatenate %284, %285, %286, %287, %288, %289, %290, %291 in 0 : vector<1x8x32xf32>, vector<1x8x32xf32>, vector<1x8x32xf32>, vector<1x8x32xf32>, vector<1x8x32xf32>, vector<1x8x32xf32>, vector<1x8x32xf32>, vector<1x8x32xf32> -> vector<8x8x32xf32>
    %cst_56 = arith.constant dense<0.000000e+00> : vector<8x8xf32>
    %293 = vector.multi_reduction <add>, %292, %cst_56 [2] : vector<8x8x32xf32> to vector<8x8xf32>
    %294 = vector.shape_cast %293 : vector<8x8xf32> to vector<8x8x1xf32>
    %cst_57 = arith.constant 3.200000e+01 : f32
    %295 = vector.broadcast %cst_57 : f32 to vector<8x8x1xf32>
    %296 = arith.divf %294, %295 : vector<8x8x1xf32>
    %297 = vector.broadcast %296 : vector<8x8x1xf32> to vector<8x8x32xf32>
    %298 = arith.subf %292, %297 : vector<8x8x32xf32>
    %299 = arith.mulf %298, %298 : vector<8x8x32xf32>
    %cst_58 = arith.constant dense<0.000000e+00> : vector<8x8xf32>
    %300 = vector.multi_reduction <add>, %299, %cst_58 [2] : vector<8x8x32xf32> to vector<8x8xf32>
    %301 = vector.shape_cast %300 : vector<8x8xf32> to vector<8x8x1xf32>
    %cst_59 = arith.constant 3.200000e+01 : f32
    %302 = vector.broadcast %cst_59 : f32 to vector<8x8x1xf32>
    %303 = arith.divf %301, %302 : vector<8x8x1xf32>
    %cst_60 = arith.constant 9.99999974E-6 : f32
    %304 = vector.broadcast %cst_60 : f32 to vector<8x8x1xf32>
    %305 = arith.addf %303, %304 : vector<8x8x1xf32>
    %306 = math.rsqrt %305 : vector<8x8x1xf32>
    %307 = vector.broadcast %306 : vector<8x8x1xf32> to vector<8x8x32xf32>
    %308 = arith.mulf %298, %307 : vector<8x8x32xf32>
    %c0_61 = arith.constant 0 : index
    %c0_62 = arith.constant 0 : index
    %c0_63 = arith.constant 0 : index
    %309 = vector.load %arg8[%c0_61, %c0_62, %c0_63] : memref<1x1x32xf32, #tpu.memory_space<vmem>>, vector<1x1x32xf32>
    %310 = vector.broadcast %309 : vector<1x1x32xf32> to vector<8x8x32xf32>
    %311 = arith.mulf %308, %310 : vector<8x8x32xf32>
    %c0_64 = arith.constant 0 : index
    %c0_65 = arith.constant 0 : index
    %c0_66 = arith.constant 0 : index
    %312 = vector.load %arg9[%c0_64, %c0_65, %c0_66] : memref<1x1x32xf32, #tpu.memory_space<vmem>>, vector<1x1x32xf32>
    %313 = vector.broadcast %312 : vector<1x1x32xf32> to vector<8x8x32xf32>
    %314 = arith.addf %311, %313 : vector<8x8x32xf32>
    %c0_67 = arith.constant 0 : index
    %c0_68 = arith.constant 0 : index
    %c0_69 = arith.constant 0 : index
    %315 = vector.load %arg10[%c0_67, %c0_68, %c0_69] : memref<8x8x32xf32, #tpu.memory_space<vmem>>, vector<8x8x32xf32>
    tpu.vector_store %arg10[%c0_67, %c0_68, %c0_69], %314 {strides = array<i32>} : memref<8x8x32xf32, #tpu.memory_space<vmem>>, vector<8x8x32xf32>,
    return
  }
  func.func @transform_0(%arg0: i32) -> (i32, i32, i32) {
    %c0_i32 = arith.constant 0 : i32
    %c0_i32_0 = arith.constant 0 : i32
    %c0_i32_1 = arith.constant 0 : i32
    %c0_i32_2 = arith.constant 0 : i32
    return %c0_i32, %c0_i32_0, %c0_i32_1 : i32, i32, i32
  }
  func.func @transform_1(%arg0: i32) -> (i32, i32) {
    %c0_i32 = arith.constant 0 : i32
    %c0_i32_0 = arith.constant 0 : i32
    %c0_i32_1 = arith.constant 0 : i32
    return %c0_i32, %c0_i32_0 : i32, i32
  }
  func.func @transform_2(%arg0: i32) -> (i32, i32) {
    %c0_i32 = arith.constant 0 : i32
    %c0_i32_0 = arith.constant 0 : i32
    %c0_i32_1 = arith.constant 0 : i32
    return %c0_i32, %c0_i32_0 : i32, i32
  }
  func.func @transform_3(%arg0: i32) -> (i32, i32) {
    %c0_i32 = arith.constant 0 : i32
    %c0_i32_0 = arith.constant 0 : i32
    %c0_i32_1 = arith.constant 0 : i32
    return %c0_i32, %c0_i32_0 : i32, i32
  }
  func.func @transform_4(%arg0: i32) -> (i32, i32) {
    %c0_i32 = arith.constant 0 : i32
    %c0_i32_0 = arith.constant 0 : i32
    %c0_i32_1 = arith.constant 0 : i32
    return %c0_i32, %c0_i32_0 : i32, i32
  }
  func.func @transform_5(%arg0: i32) -> (i32, i32, i32) {
    %c0_i32 = arith.constant 0 : i32
    %c0_i32_0 = arith.constant 0 : i32
    %c0_i32_1 = arith.constant 0 : i32
    %c0_i32_2 = arith.constant 0 : i32
    return %c0_i32, %c0_i32_0, %c0_i32_1 : i32, i32, i32
  }
  func.func @transform_6(%arg0: i32) -> (i32, i32, i32) {
    %c0_i32 = arith.constant 0 : i32
    %c0_i32_0 = arith.constant 0 : i32
    %c0_i32_1 = arith.constant 0 : i32
    %c0_i32_2 = arith.constant 0 : i32
    return %c0_i32, %c0_i32_0, %c0_i32_1 : i32, i32, i32
  }
  func.func @transform_7(%arg0: i32) -> (i32, i32, i32) {
    %c0_i32 = arith.constant 0 : i32
    %c0_i32_0 = arith.constant 0 : i32
    %c0_i32_1 = arith.constant 0 : i32
    %c0_i32_2 = arith.constant 0 : i32
    return %c0_i32, %c0_i32_0, %c0_i32_1 : i32, i32, i32
  }
  func.func @transform_8(%arg0: i32) -> (i32, i32, i32) {
    %c0_i32 = arith.constant 0 : i32
    %c0_i32_0 = arith.constant 0 : i32
    %c0_i32_1 = arith.constant 0 : i32
    %c0_i32_2 = arith.constant 0 : i32
    return %c0_i32, %c0_i32_0, %c0_i32_1 : i32, i32, i32
  }
  func.func @transform_9(%arg0: i32) -> (i32, i32, i32) {
    %c0_i32 = arith.constant 0 : i32
    %c0_i32_0 = arith.constant 0 : i32
    %c0_i32_1 = arith.constant 0 : i32
    %c0_i32_2 = arith.constant 0 : i32
    return %c0_i32, %c0_i32_0, %c0_i32_1 : i32, i32, i32
  }
}

</mosaic_0001>

<llo_original>
// kernel: tpu_custom_call.1
$region0: #{tpu_custom_call.1}
  #allocation0 [shape = 'u32[]', space=smem, size = 0x4, offset = 0x4, fixed_abs, tag = 'smem constant byte address 0x4 - core index']
  #allocation1 [shape = 'u32[144,128]{1,0:T(1,128)}', space=vmem, size = 0x12000, scoped, tag = 'internal scratch']
  %s0 = inlined_call_operand.hbm [shape: f32[8,8,16], index: 0, kind: input, shape index: {}]
  %s1 = inlined_call_operand.hbm [shape: bf16[16,128], index: 1, kind: input, shape index: {}]
  %s2 = inlined_call_operand.vmem [shape: bf16[32,128], index: 2, kind: input, shape index: {}]
  %s3 = inlined_call_operand.vmem [shape: f32[1,128], index: 3, kind: input, shape index: {}]
  %s4 = inlined_call_operand.vmem [shape: f32[1,32], index: 4, kind: input, shape index: {}]
  %s5 = inlined_call_operand.vmem [shape: f32[1,8,1], index: 5, kind: input, shape index: {}]
  %s6 = inlined_call_operand.vmem [shape: f32[1,8,1], index: 6, kind: input, shape index: {}]
  %s7 = inlined_call_operand.vmem [shape: f32[1,1,32], index: 7, kind: input, shape index: {}]
  %s8 = inlined_call_operand.vmem [shape: f32[1,1,32], index: 8, kind: input, shape index: {}]
  %s9 = inlined_call_operand.hbm [shape: f32[8,8,32], index: 9, kind: output, shape index: {}]
  %s10 = sld [smem:[#allocation0]]
  $region54: #{tpu_custom_call.1} parent=0
    _
  %s12 = ssub.s32 1, %s10
  %s13 = scalar_select 0, %s12, %s10
  $region1: #{tpu_custom_call.1} parent=0
    #allocation2 [shape = 'u8[32768]{0}', space=vmem, size = 0x8000, scoped, tag = 'input window, operand 0, single buffered']
    #allocation3 [shape = 's32[1]{0}', space=sflag, size = 0x4, scoped, tag = 'scoped memory for tpu_custom_call.1']
    #allocation4 [shape = 's32[1]{0}', space=sflag, size = 0x4, scoped, tag = 'scoped memory for tpu_custom_call.1']
    #allocation5 [shape = 'u8[4096]{0}', space=vmem, size = 0x1000, scoped, tag = 'input window, operand 1, single buffered']
    #allocation6 [shape = 's32[1]{0}', space=sflag, size = 0x4, scoped, tag = 'scoped memory for tpu_custom_call.1']
    #allocation7 [shape = 'u8[32768]{0}', space=vmem, size = 0x8000, scoped, tag = 'output window, operand 0, single buffered']
    %14 = vsyncpa [#allocation3], 0
    %15 = vsyncpa [#allocation6], 0
    %16 = vsyncpa [#allocation4], 0
    // Predicated region
    $region2: #{tpu_custom_call.1} parent=1 // pred_check
      _
    $region3: #{tpu_custom_call.1} parent=1 // pred_check_branch
      %18 = sbr.rel (0) target = $region5
    $region4: #{tpu_custom_call.1} parent=1 // pred_region
      %s20 = ssub.s32 1024, 1024
      %21 = vsyncadd [#allocation3], %s20
      %s22 = sshll.u32 [#allocation2], 4
      %s23 = int_to_ptr.vmem [resolvable:$true] %s22
      %28 = dma.hbm_to_vmem [thread:$0]  %s0, 1024, %s23, [#allocation3], 128, 128, 8
    $region5: #{tpu_custom_call.1} parent=1 // pred_fallthru
      _
    // Predicated region
    $region6: #{tpu_custom_call.1} parent=1 // pred_check
      _
    $region7: #{tpu_custom_call.1} parent=1 // pred_check_branch
      %30 = sbr.rel (0) target = $region9
    $region8: #{tpu_custom_call.1} parent=1 // pred_region
      %s32 = ssub.s32 128, 128
      %33 = vsyncadd [#allocation6], %s32
      %s34 = sshll.u32 [#allocation5], 4
      %s35 = int_to_ptr.vmem [resolvable:$true] %s34
      %40 = dma.hbm_to_vmem [thread:$0]  %s1, 128, %s35, [#allocation6], 64, 64, 4
    $region9: #{tpu_custom_call.1} parent=1 // pred_fallthru
      _
    // Predicated region
    $region10: #{tpu_custom_call.1} parent=1 // pred_check
      _
    $region11: #{tpu_custom_call.1} parent=1 // pred_check_branch
      %42 = sbr.rel (0) target = $region13
    $region12: #{tpu_custom_call.1} parent=1 // pred_region
      _
    $region13: #{tpu_custom_call.1} parent=1 // pred_fallthru
      _
    // Predicated region
    $region14: #{tpu_custom_call.1} parent=1 // pred_check
      _
    $region15: #{tpu_custom_call.1} parent=1 // pred_check_branch
      %44 = sbr.rel (0) target = $region17
    $region16: #{tpu_custom_call.1} parent=1 // pred_region
      _
    $region17: #{tpu_custom_call.1} parent=1 // pred_fallthru
      _
    // Predicated region
    $region18: #{tpu_custom_call.1} parent=1 // pred_check
      _
    $region19: #{tpu_custom_call.1} parent=1 // pred_check_branch
      %46 = sbr.rel (0) target = $region21
    $region20: #{tpu_custom_call.1} parent=1 // pred_region
      _
    $region21: #{tpu_custom_call.1} parent=1 // pred_fallthru
      _
    // Predicated region
    $region22: #{tpu_custom_call.1} parent=1 // pred_check
      _
    $region23: #{tpu_custom_call.1} parent=1 // pred_check_branch
      %48 = sbr.rel (0) target = $region25
    $region24: #{tpu_custom_call.1} parent=1 // pred_region
      _
    $region25: #{tpu_custom_call.1} parent=1 // pred_fallthru
      _
    // Predicated region
    $region26: #{tpu_custom_call.1} parent=1 // pred_check
      _
    $region27: #{tpu_custom_call.1} parent=1 // pred_check_branch
      %50 = sbr.rel (0) target = $region29
    $region28: #{tpu_custom_call.1} parent=1 // pred_region
      _
    $region29: #{tpu_custom_call.1} parent=1 // pred_fallthru
      _
    // Predicated region
    $region30: #{tpu_custom_call.1} parent=1 // pred_check
      _
    $region31: #{tpu_custom_call.1} parent=1 // pred_check_branch
      %52 = sbr.rel (0) target = $region33
    $region32: #{tpu_custom_call.1} parent=1 // pred_region
      _
    $region33: #{tpu_custom_call.1} parent=1 // pred_fallthru
      _
    // Predicated region
    $region34: #{tpu_custom_call.1} parent=1 // pred_check
      _
    $region35: #{tpu_custom_call.1} parent=1 // pred_check_branch
      %54 = sbr.rel (0) target = $region37
    $region36: #{tpu_custom_call.1} parent=1 // pred_region
      _
    $region37: #{tpu_custom_call.1} parent=1 // pred_fallthru
      _
    // Predicated region
    $region38: #{tpu_custom_call.1} parent=1 // pred_check
      _
    $region39: #{tpu_custom_call.1} parent=1 // pred_check_branch
      %56 = sbr.rel (0) target = $region41
    $region40: #{tpu_custom_call.1} parent=1 // pred_region
      %57 = dma.done [#allocation3], 1024
    $region41: #{tpu_custom_call.1} parent=1 // pred_fallthru
      _
    // Predicated region
    $region42: #{tpu_custom_call.1} parent=1 // pred_check
      _
    $region43: #{tpu_custom_call.1} parent=1 // pred_check_branch
      %59 = sbr.rel (0) target = $region45
    $region44: #{tpu_custom_call.1} parent=1 // pred_region
      %60 = dma.done [#allocation6], 128
    $region45: #{tpu_custom_call.1} parent=1 // pred_fallthru
      _
    %v62 = vld [vmem:[#allocation2] sm:$0xff]
    %v63 = vld [vmem:[#allocation2 + $0x8] sm:$0xff]
    %v64 = vld [vmem:[#allocation2 + $0x10] sm:$0xff]
    %v65 = vld [vmem:[#allocation2 + $0x18] sm:$0xff]
    %v66 = vld [vmem:[#allocation2 + $0x20] sm:$0xff]
    %v67 = vld [vmem:[#allocation2 + $0x28] sm:$0xff]
    %v68 = vld [vmem:[#allocation2 + $0x30] sm:$0xff]
    %v69 = vld [vmem:[#allocation2 + $0x38] sm:$0xff]
    %vm70 = vcmask 130048
    %v71 = vsel %vm70, %v62, 0.0
    %72 = vadd.xlane.f32.xlu0 %v71
    %v73 = vpop.xlane.xlu0 %72
    %v74 = vsel %vm70, %v63, 0.0
    %75 = vadd.xlane.f32.xlu0 %v74
    %v76 = vpop.xlane.xlu0 %75
    %v77 = vsel %vm70, %v64, 0.0
    %78 = vadd.xlane.f32.xlu0 %v77
    %v79 = vpop.xlane.xlu0 %78
    %v80 = vsel %vm70, %v65, 0.0
    %81 = vadd.xlane.f32.xlu0 %v80
    %v82 = vpop.xlane.xlu0 %81
    %v83 = vsel %vm70, %v66, 0.0
    %84 = vadd.xlane.f32.xlu0 %v83
    %v85 = vpop.xlane.xlu0 %84
    %v86 = vsel %vm70, %v67, 0.0
    %87 = vadd.xlane.f32.xlu0 %v86
    %v88 = vpop.xlane.xlu0 %87
    %v89 = vsel %vm70, %v68, 0.0
    %90 = vadd.xlane.f32.xlu0 %v89
    %v91 = vpop.xlane.xlu0 %90
    %v92 = vsel %vm70, %v69, 0.0
    %93 = vadd.xlane.f32.xlu0 %v92
    %v94 = vpop.xlane.xlu0 %93
    %v95 = vadd.f32 %v73, %v76
    %v96 = vadd.f32 %v95, %v79
    %v97 = vadd.f32 %v96, %v82
    %v98 = vadd.f32 %v97, %v85
    %v99 = vadd.f32 %v98, %v88
    %v100 = vadd.f32 %v99, %v91
    %v101 = vadd.f32 %v100, %v94
    %v102 = vmul.f32 %v101, 0.0078125
    %v103 = vsub.f32 %v62, %v102
    %v104 = vsub.f32 %v63, %v102
    %v105 = vsub.f32 %v64, %v102
    %v106 = vsub.f32 %v65, %v102
    %v107 = vsub.f32 %v66, %v102
    %v108 = vsub.f32 %v67, %v102
    %v109 = vsub.f32 %v68, %v102
    %v110 = vsub.f32 %v69, %v102
    %v111 = vmul.f32 %v103, %v103
    %v112 = vmul.f32 %v104, %v104
    %v113 = vmul.f32 %v105, %v105
    %v114 = vmul.f32 %v106, %v106
    %v115 = vmul.f32 %v107, %v107
    %v116 = vmul.f32 %v108, %v108
    %v117 = vmul.f32 %v109, %v109
    %v118 = vmul.f32 %v110, %v110
    %v119 = vsel %vm70, %v111, 0.0
    %120 = vadd.xlane.f32.xlu0 %v119
    %v121 = vpop.xlane.xlu0 %120
    %v122 = vsel %vm70, %v112, 0.0
    %123 = vadd.xlane.f32.xlu0 %v122
    %v124 = vpop.xlane.xlu0 %123
    %v125 = vsel %vm70, %v113, 0.0
    %126 = vadd.xlane.f32.xlu0 %v125
    %v127 = vpop.xlane.xlu0 %126
    %v128 = vsel %vm70, %v114, 0.0
    %129 = vadd.xlane.f32.xlu0 %v128
    %v130 = vpop.xlane.xlu0 %129
    %v131 = vsel %vm70, %v115, 0.0
    %132 = vadd.xlane.f32.xlu0 %v131
    %v133 = vpop.xlane.xlu0 %132
    %v134 = vsel %vm70, %v116, 0.0
    %135 = vadd.xlane.f32.xlu0 %v134
    %v136 = vpop.xlane.xlu0 %135
    %v137 = vsel %vm70, %v117, 0.0
    %138 = vadd.xlane.f32.xlu0 %v137
    %v139 = vpop.xlane.xlu0 %138
    %v140 = vsel %vm70, %v118, 0.0
    %141 = vadd.xlane.f32.xlu0 %v140
    %v142 = vpop.xlane.xlu0 %141
    %v143 = vadd.f32 %v121, %v124
    %v144 = vadd.f32 %v143, %v127
    %v145 = vadd.f32 %v144, %v130
    %v146 = vadd.f32 %v145, %v133
    %v147 = vadd.f32 %v146, %v136
    %v148 = vadd.f32 %v147, %v139
    %v149 = vadd.f32 %v148, %v142
    %v150 = vmul.f32 %v149, 0.0078125
    %v151 = vld [vmem:[%s5] sm:$0xff]
    %v152 = vadd.f32 %v150, 1e-05
    %v153 = vrsqrt.pop %v152
    %v154 = vmul.f32 %v151, %v153
    %156 = vset.pattern.permute.xlu0 0
    %157 = vperm.xlu0 %156, %v154
    %v158 = vpop.permute.xlu0 %157
    %v160 = vmul.f32 %v103, %v158
    %v161 = vmul.f32 %v104, %v158
    %v162 = vmul.f32 %v105, %v158
    %v163 = vmul.f32 %v106, %v158
    %v164 = vmul.f32 %v107, %v158
    %v165 = vmul.f32 %v108, %v158
    %v166 = vmul.f32 %v109, %v158
    %v167 = vmul.f32 %v110, %v158
    %v168 = vld [vmem:[%s6] sm:$0xff]
    %170 = vset.pattern.permute.xlu0 0
    %171 = vperm.xlu0 %170, %v168
    %v172 = vpop.permute.xlu0 %171
    %v174 = vadd.f32 %v160, %v172
    %v175 = vadd.f32 %v161, %v172
    %v176 = vadd.f32 %v162, %v172
    %v177 = vadd.f32 %v163, %v172
    %v178 = vadd.f32 %v164, %v172
    %v179 = vadd.f32 %v165, %v172
    %v180 = vadd.f32 %v166, %v172
    %v181 = vadd.f32 %v167, %v172
    %v182 = vpack.c.bf16 %v175, %v174
    %v183 = vpack.c.bf16 %v177, %v176
    %v184 = vpack.c.bf16 %v179, %v178
    %v185 = vpack.c.bf16 %v181, %v180
    %v186 = vld [vmem:[#allocation5] sm:$0xf]
    %v187 = vld [vmem:[#allocation5 + $0x4] sm:$0xf]
    %v188 = vld [vmem:[%s3] sm:$0x1]
    %v190 = vlaneseq
    %v191 = vshrl.u32 %v190, 7
    %v192 = vsub.s32 0, %v191
    %v193 = vrot.slane %v188, %v192
    %v197 = vunpack.c.l.b16 %v186
    %v198 = vunpack.c.l.b16 %v187
    %v199 = vpack.c.b16 %v198, %v197
    %v202 = vsel %vm70, %v182, 0
    %v205 = vsel %vm70, %v183, 0
    %v208 = vsel %vm70, %v184, 0
    %v211 = vsel %vm70, %v185, 0
    %213 = vmatprep.subr.bf16.mxu0 0
    %214 = vmatpush1.bf16.msra.mxu0 0
    %215 = vmatprep.subr.bf16.mxu0 0
    %216 = vmatpush1.bf16.msra.mxu0 0
    %217 = vmatprep.subr.bf16.mxu0 0
    %218 = vmatpush1.bf16.msra.mxu0 0
    %219 = vmatprep.subr.bf16.mxu0 0
    %220 = vmatpush1.bf16.msra.mxu0 0
    %221 = vmatprep.subr.bf16.mxu0 0
    %222 = vmatpush1.bf16.msra.mxu0 0
    %223 = vmatprep.subr.bf16.mxu0 0
    %224 = vmatpush1.bf16.msra.mxu0 0
    %225 = vmatprep.subr.bf16.mxu0 0
    %226 = vmatpush1.bf16.msra.mxu0 0
    %227 = vmatprep.subr.bf16.mxu0 0
    %228 = vmatpush1.bf16.msra.mxu0 %v199
    %229 = vmatprep.subr.bf16.mxu0 0
    %230 = vmatpush2.bf16.msra.mxu0 0
    %231 = vmatprep.subr.bf16.mxu0 0
    %232 = vmatpush2.bf16.msra.mxu0 0
    %233 = vmatprep.subr.bf16.mxu0 0
    %234 = vmatpush2.bf16.msra.mxu0 0
    %235 = vmatprep.subr.bf16.mxu0 0
    %236 = vmatpush2.bf16.msra.mxu0 0
    %237 = vmatprep.subr.bf16.mxu0 0
    %238 = vmatpush2.bf16.msra.mxu0 0
    %239 = vmatprep.subr.bf16.mxu0 0
    %240 = vmatpush2.bf16.msra.mxu0 0
    %241 = vmatprep.subr.bf16.mxu0 0
    %242 = vmatpush2.bf16.msra.mxu0 0
    %243 = vmatprep.subr.bf16.mxu0 0
    %244 = vmatpush2.bf16.msra.mxu0 0
    %245 = vmatprep.mubr.bf16.mxu0 0
    %246 = vmatmul.mubr.bf16.gmra.mxu0 %v202
    %v247 = vpop.f32.mrf.mxu0
    %v248 = vadd.f32 %v193, %v247
    %v249 = vpop.f32.mrf.mxu0
    %v250 = vpop.f32.mrf.mxu0
    %v251 = vadd.f32 %v193, %v250
    %v252 = vpop.f32.mrf.mxu0
    %253 = vmatprep.mubr.bf16.mxu0 0
    %254 = vmatmul.mubr.bf16.gmra.mxu0 %v205
    %v255 = vpop.f32.mrf.mxu0
    %v256 = vadd.f32 %v193, %v255
    %v257 = vpop.f32.mrf.mxu0
    %v258 = vpop.f32.mrf.mxu0
    %v259 = vadd.f32 %v193, %v258
    %v260 = vpop.f32.mrf.mxu0
    %261 = vmatprep.mubr.bf16.mxu0 0
    %262 = vmatmul.mubr.bf16.gmra.mxu0 %v208
    %v263 = vpop.f32.mrf.mxu0
    %v264 = vadd.f32 %v193, %v263
    %v265 = vpop.f32.mrf.mxu0
    %v266 = vpop.f32.mrf.mxu0
    %v267 = vadd.f32 %v193, %v266
    %v268 = vpop.f32.mrf.mxu0
    %269 = vmatprep.mubr.bf16.mxu0 0
    %270 = vmatmul.mubr.bf16.gmra.mxu0 %v211
    %v271 = vpop.f32.mrf.mxu0
    %v272 = vadd.f32 %v193, %v271
    %v273 = vpop.f32.mrf.mxu0
    %v274 = vpop.f32.mrf.mxu0
    %v275 = vadd.f32 %v193, %v274
    %v276 = vpop.f32.mrf.mxu0
    %277 = vdwg.mxu0
    %v278 = vld [vmem:[%s2] sm:$0xf]
    %v279 = vld [vmem:[%s2 + $0x4] sm:$0xf]
    %v280 = vld [vmem:[%s2 + $0x8] sm:$0xf]
    %v281 = vld [vmem:[%s2 + $0xc] sm:$0xf]
    %v282 = vld [vmem:[%s4] sm:$0x1]
    %v287 = vunpack.c.l.b16 %v278
    %v288 = vunpack.c.l.b16 %v279
    %v289 = vunpack.c.l.b16 %v280
    %v290 = vunpack.c.l.b16 %v281
    %v291 = vpack.c.b16 %v288, %v287
    %v292 = vpack.c.b16 %v290, %v289
    %vm295 = vcmask 261120
    %v297 = vsel %vm295, 0, 0
    %299 = vmatprep.subr.bf16.mxu0 0
    %300 = vmatpush1.bf16.msra.mxu0 0
    %301 = vmatprep.subr.bf16.mxu0 0
    %302 = vmatpush1.bf16.msra.mxu0 0
    %303 = vmatprep.subr.bf16.mxu0 0
    %304 = vmatpush1.bf16.msra.mxu0 0
    %305 = vmatprep.subr.bf16.mxu0 0
    %306 = vmatpush1.bf16.msra.mxu0 0
    %307 = vmatprep.subr.bf16.mxu0 0
    %308 = vmatpush1.bf16.msra.mxu0 0
    %309 = vmatprep.subr.bf16.mxu0 0
    %310 = vmatpush1.bf16.msra.mxu0 0
    %311 = vmatprep.subr.bf16.mxu0 0
    %312 = vmatpush1.bf16.msra.mxu0 %v292
    %313 = vmatprep.subr.bf16.mxu0 0
    %314 = vmatpush1.bf16.msra.mxu0 %v291
    %315 = vmatprep.subr.bf16.mxu0 0
    %316 = vmatpush2.bf16.msra.mxu0 0
    %317 = vmatprep.subr.bf16.mxu0 0
    %318 = vmatpush2.bf16.msra.mxu0 0
    %319 = vmatprep.subr.bf16.mxu0 0
    %320 = vmatpush2.bf16.msra.mxu0 0
    %321 = vmatprep.subr.bf16.mxu0 0
    %322 = vmatpush2.bf16.msra.mxu0 0
    %323 = vmatprep.subr.bf16.mxu0 0
    %324 = vmatpush2.bf16.msra.mxu0 0
    %325 = vmatprep.subr.bf16.mxu0 0
    %326 = vmatpush2.bf16.msra.mxu0 0
    %327 = vmatprep.subr.bf16.mxu0 0
    %328 = vmatpush2.bf16.msra.mxu0 0
    %329 = vmatprep.subr.bf16.mxu0 0
    %330 = vmatpush2.bf16.msra.mxu0 0
    %331 = vmatprep.mubr.bf16.mxu0 0
    %332 = vmatmul.mubr.bf16.gmra.mxu0 %v297
    %v333 = vpop.f32.mrf.mxu0
    %v334 = vadd.f32 0.0, %v333
    %v335 = vpop.f32.mrf.mxu0
    %v336 = vpop.f32.mrf.mxu0
    %v337 = vpop.f32.mrf.mxu0
    %338 = vdwg.mxu0
    %v339 = vadd.f32 %v248, %v334
    %v340 = vxor.u32 %v339, 2147483648
    %v341 = vmul.f32 %v340, 1.442695
    %v342 = vpow.pop %v341
    %v343 = vadd.f32 %v342, 1.0
    %v344 = vrcp.pop %v343
    %v345 = vmul.f32 1.0, %v344
    %v347 = vlaneseq
    %v348 = vshrl.u32 %v347, 7
    %v349 = vsub.s32 0, %v348
    %v350 = vrot.slane %v282, %v349
    %351 = vrot.lane.b32.xlu0 %v350, 64
    %v352 = vpop.permute.xlu0 %351
    %v354 = vadd.f32 %v334, %v352
    %356 = vrot.lane.b32.xlu0 %v354, 64
    %v357 = vpop.permute.xlu0 %356
    %v359 = vmul.f32 %v345, %v357
    %361 = vrot.lane.b32.xlu0 %v359, 64
    %v362 = vpop.permute.xlu0 %361
    %v364 = vadd.f32 %v248, %v362
    %v365 = vtanh.pop %v364
    %v366 = vsub.f32 1.0, %v345
    %368 = vrot.lane.b32.xlu0 %v365, 96
    %v369 = vpop.permute.xlu0 %368
    %v371 = vmul.f32 %v366, %v369
    %v372 = vmul.f32 %v345, 0.0
    %v373 = vadd.f32 %v371, %v372
    %v374 = vpack.c.bf16 %v373, %v373
    %376 = vrot.lane.b32.xlu0 %v374, 96
    %v377 = vpop.permute.xlu0 %376
    %v379 = vsel %vm295, %v377, 0
    %381 = vmatprep.subr.bf16.mxu0 0
    %382 = vmatpush1.bf16.msra.mxu0 0
    %383 = vmatprep.subr.bf16.mxu0 0
    %384 = vmatpush1.bf16.msra.mxu0 0
    %385 = vmatprep.subr.bf16.mxu0 0
    %386 = vmatpush1.bf16.msra.mxu0 0
    %387 = vmatprep.subr.bf16.mxu0 0
    %388 = vmatpush1.bf16.msra.mxu0 0
    %389 = vmatprep.subr.bf16.mxu0 0
    %390 = vmatpush1.bf16.msra.mxu0 0
    %391 = vmatprep.subr.bf16.mxu0 0
    %392 = vmatpush1.bf16.msra.mxu0 0
    %393 = vmatprep.subr.bf16.mxu0 0
    %394 = vmatpush1.bf16.msra.mxu0 %v292
    %395 = vmatprep.subr.bf16.mxu0 0
    %396 = vmatpush1.bf16.msra.mxu0 %v291
    %397 = vmatprep.subr.bf16.mxu0 0
    %398 = vmatpush2.bf16.msra.mxu0 0
    %399 = vmatprep.subr.bf16.mxu0 0
    %400 = vmatpush2.bf16.msra.mxu0 0
    %401 = vmatprep.subr.bf16.mxu0 0
    %402 = vmatpush2.bf16.msra.mxu0 0
    %403 = vmatprep.subr.bf16.mxu0 0
    %404 = vmatpush2.bf16.msra.mxu0 0
    %405 = vmatprep.subr.bf16.mxu0 0
    %406 = vmatpush2.bf16.msra.mxu0 0
    %407 = vmatprep.subr.bf16.mxu0 0
    %408 = vmatpush2.bf16.msra.mxu0 0
    %409 = vmatprep.subr.bf16.mxu0 0
    %410 = vmatpush2.bf16.msra.mxu0 0
    %411 = vmatprep.subr.bf16.mxu0 0
    %412 = vmatpush2.bf16.msra.mxu0 0
    %413 = vmatprep.mubr.bf16.mxu0 0
    %414 = vmatmul.mubr.bf16.gmra.mxu0 %v379
    %v415 = vpop.f32.mrf.mxu0
    %v416 = vadd.f32 0.0, %v415
    %v417 = vpop.f32.mrf.mxu0
    %v418 = vpop.f32.mrf.mxu0
    %v419 = vpop.f32.mrf.mxu0
    %420 = vdwg.mxu0
    %v421 = vadd.f32 %v251, %v416
    %v422 = vxor.u32 %v421, 2147483648
    %v423 = vmul.f32 %v422, 1.442695
    %v424 = vpow.pop %v423
    %v425 = vadd.f32 %v424, 1.0
    %v426 = vrcp.pop %v425
    %v427 = vmul.f32 1.0, %v426
    %v428 = vadd.f32 %v416, %v352
    %430 = vrot.lane.b32.xlu0 %v428, 64
    %v431 = vpop.permute.xlu0 %430
    %v433 = vmul.f32 %v427, %v431
    %435 = vrot.lane.b32.xlu0 %v433, 64
    %v436 = vpop.permute.xlu0 %435
    %v438 = vadd.f32 %v251, %v436
    %v439 = vtanh.pop %v438
    %v440 = vsub.f32 1.0, %v427
    %442 = vrot.lane.b32.xlu0 %v439, 96
    %v443 = vpop.permute.xlu0 %442
    %v445 = vmul.f32 %v440, %v443
    %v446 = vmul.f32 %v427, %v373
    %v447 = vadd.f32 %v445, %v446
    %v448 = vpack.c.bf16 %v447, %v447
    %450 = vrot.lane.b32.xlu0 %v448, 96
    %v451 = vpop.permute.xlu0 %450
    %v453 = vsel %vm295, %v451, 0
    %455 = vmatprep.subr.bf16.mxu0 0
    %456 = vmatpush1.bf16.msra.mxu0 0
    %457 = vmatprep.subr.bf16.mxu0 0
    %458 = vmatpush1.bf16.msra.mxu0 0
    %459 = vmatprep.subr.bf16.mxu0 0
    %460 = vmatpush1.bf16.msra.mxu0 0
    %461 = vmatprep.subr.bf16.mxu0 0
    %462 = vmatpush1.bf16.msra.mxu0 0
    %463 = vmatprep.subr.bf16.mxu0 0
    %464 = vmatpush1.bf16.msra.mxu0 0
    %465 = vmatprep.subr.bf16.mxu0 0
    %466 = vmatpush1.bf16.msra.mxu0 0
    %467 = vmatprep.subr.bf16.mxu0 0
    %468 = vmatpush1.bf16.msra.mxu0 %v292
    %469 = vmatprep.subr.bf16.mxu0 0
    %470 = vmatpush1.bf16.msra.mxu0 %v291
    %471 = vmatprep.subr.bf16.mxu0 0
    %472 = vmatpush2.bf16.msra.mxu0 0
    %473 = vmatprep.subr.bf16.mxu0 0
    %474 = vmatpush2.bf16.msra.mxu0 0
    %475 = vmatprep.subr.bf16.mxu0 0
    %476 = vmatpush2.bf16.msra.mxu0 0
    %477 = vmatprep.subr.bf16.mxu0 0
    %478 = vmatpush2.bf16.msra.mxu0 0
    %479 = vmatprep.subr.bf16.mxu0 0
    %480 = vmatpush2.bf16.msra.mxu0 0
    %481 = vmatprep.subr.bf16.mxu0 0
    %482 = vmatpush2.bf16.msra.mxu0 0
    %483 = vmatprep.subr.bf16.mxu0 0
    %484 = vmatpush2.bf16.msra.mxu0 0
    %485 = vmatprep.subr.bf16.mxu0 0
    %486 = vmatpush2.bf16.msra.mxu0 0
    %487 = vmatprep.mubr.bf16.mxu0 0
    %488 = vmatmul.mubr.bf16.gmra.mxu0 %v453
    %v489 = vpop.f32.mrf.mxu0
    %v490 = vadd.f32 0.0, %v489
    %v491 = vpop.f32.mrf.mxu0
    %v492 = vpop.f32.mrf.mxu0
    %v493 = vpop.f32.mrf.mxu0
    %494 = vdwg.mxu0
    %v495 = vadd.f32 %v256, %v490
    %v496 = vxor.u32 %v495, 2147483648
    %v497 = vmul.f32 %v496, 1.442695
    %v498 = vpow.pop %v497
    %v499 = vadd.f32 %v498, 1.0
    %v500 = vrcp.pop %v499
    %v501 = vmul.f32 1.0, %v500
    %v502 = vadd.f32 %v490, %v352
    %504 = vrot.lane.b32.xlu0 %v502, 64
    %v505 = vpop.permute.xlu0 %504
    %v507 = vmul.f32 %v501, %v505
    %509 = vrot.lane.b32.xlu0 %v507, 64
    %v510 = vpop.permute.xlu0 %509
    %v512 = vadd.f32 %v256, %v510
    %v513 = vtanh.pop %v512
    %v514 = vsub.f32 1.0, %v501
    %516 = vrot.lane.b32.xlu0 %v513, 96
    %v517 = vpop.permute.xlu0 %516
    %v519 = vmul.f32 %v514, %v517
    %v520 = vmul.f32 %v501, %v447
    %v521 = vadd.f32 %v519, %v520
    %v522 = vpack.c.bf16 %v521, %v521
    %524 = vrot.lane.b32.xlu0 %v522, 96
    %v525 = vpop.permute.xlu0 %524
    %v527 = vsel %vm295, %v525, 0
    %529 = vmatprep.subr.bf16.mxu0 0
    %530 = vmatpush1.bf16.msra.mxu0 0
    %531 = vmatprep.subr.bf16.mxu0 0
    %532 = vmatpush1.bf16.msra.mxu0 0
    %533 = vmatprep.subr.bf16.mxu0 0
    %534 = vmatpush1.bf16.msra.mxu0 0
    %535 = vmatprep.subr.bf16.mxu0 0
    %536 = vmatpush1.bf16.msra.mxu0 0
    %537 = vmatprep.subr.bf16.mxu0 0
    %538 = vmatpush1.bf16.msra.mxu0 0
    %539 = vmatprep.subr.bf16.mxu0 0
    %540 = vmatpush1.bf16.msra.mxu0 0
    %541 = vmatprep.subr.bf16.mxu0 0
    %542 = vmatpush1.bf16.msra.mxu0 %v292
    %543 = vmatprep.subr.bf16.mxu0 0
    %544 = vmatpush1.bf16.msra.mxu0 %v291
    %545 = vmatprep.subr.bf16.mxu0 0
    %546 = vmatpush2.bf16.msra.mxu0 0
    %547 = vmatprep.subr.bf16.mxu0 0
    %548 = vmatpush2.bf16.msra.mxu0 0
    %549 = vmatprep.subr.bf16.mxu0 0
    %550 = vmatpush2.bf16.msra.mxu0 0
    %551 = vmatprep.subr.bf16.mxu0 0
    %552 = vmatpush2.bf16.msra.mxu0 0
    %553 = vmatprep.subr.bf16.mxu0 0
    %554 = vmatpush2.bf16.msra.mxu0 0
    %555 = vmatprep.subr.bf16.mxu0 0
    %556 = vmatpush2.bf16.msra.mxu0 0
    %557 = vmatprep.subr.bf16.mxu0 0
    %558 = vmatpush2.bf16.msra.mxu0 0
    %559 = vmatprep.subr.bf16.mxu0 0
    %560 = vmatpush2.bf16.msra.mxu0 0
    %561 = vmatprep.mubr.bf16.mxu0 0
    %562 = vmatmul.mubr.bf16.gmra.mxu0 %v527
    %v563 = vpop.f32.mrf.mxu0
    %v564 = vadd.f32 0.0, %v563
    %v565 = vpop.f32.mrf.mxu0
    %v566 = vpop.f32.mrf.mxu0
    %v567 = vpop.f32.mrf.mxu0
    %568 = vdwg.mxu0
    %v569 = vadd.f32 %v259, %v564
    %v570 = vxor.u32 %v569, 2147483648
    %v571 = vmul.f32 %v570, 1.442695
    %v572 = vpow.pop %v571
    %v573 = vadd.f32 %v572, 1.0
    %v574 = vrcp.pop %v573
    %v575 = vmul.f32 1.0, %v574
    %v576 = vadd.f32 %v564, %v352
    %578 = vrot.lane.b32.xlu0 %v576, 64
    %v579 = vpop.permute.xlu0 %578
    %v581 = vmul.f32 %v575, %v579
    %583 = vrot.lane.b32.xlu0 %v581, 64
    %v584 = vpop.permute.xlu0 %583
    %v586 = vadd.f32 %v259, %v584
    %v587 = vtanh.pop %v586
    %v588 = vsub.f32 1.0, %v575
    %590 = vrot.lane.b32.xlu0 %v587, 96
    %v591 = vpop.permute.xlu0 %590
    %v593 = vmul.f32 %v588, %v591
    %v594 = vmul.f32 %v575, %v521
    %v595 = vadd.f32 %v593, %v594
    %v596 = vpack.c.bf16 %v595, %v595
    %598 = vrot.lane.b32.xlu0 %v596, 96
    %v599 = vpop.permute.xlu0 %598
    %v601 = vsel %vm295, %v599, 0
    %603 = vmatprep.subr.bf16.mxu0 0
    %604 = vmatpush1.bf16.msra.mxu0 0
    %605 = vmatprep.subr.bf16.mxu0 0
    %606 = vmatpush1.bf16.msra.mxu0 0
    %607 = vmatprep.subr.bf16.mxu0 0
    %608 = vmatpush1.bf16.msra.mxu0 0
    %609 = vmatprep.subr.bf16.mxu0 0
    %610 = vmatpush1.bf16.msra.mxu0 0
    %611 = vmatprep.subr.bf16.mxu0 0
    %612 = vmatpush1.bf16.msra.mxu0 0
    %613 = vmatprep.subr.bf16.mxu0 0
    %614 = vmatpush1.bf16.msra.mxu0 0
    %615 = vmatprep.subr.bf16.mxu0 0
    %616 = vmatpush1.bf16.msra.mxu0 %v292
    %617 = vmatprep.subr.bf16.mxu0 0
    %618 = vmatpush1.bf16.msra.mxu0 %v291
    %619 = vmatprep.subr.bf16.mxu0 0
    %620 = vmatpush2.bf16.msra.mxu0 0
    %621 = vmatprep.subr.bf16.mxu0 0
    %622 = vmatpush2.bf16.msra.mxu0 0
    %623 = vmatprep.subr.bf16.mxu0 0
    %624 = vmatpush2.bf16.msra.mxu0 0
    %625 = vmatprep.subr.bf16.mxu0 0
    %626 = vmatpush2.bf16.msra.mxu0 0
    %627 = vmatprep.subr.bf16.mxu0 0
    %628 = vmatpush2.bf16.msra.mxu0 0
    %629 = vmatprep.subr.bf16.mxu0 0
    %630 = vmatpush2.bf16.msra.mxu0 0
    %631 = vmatprep.subr.bf16.mxu0 0
    %632 = vmatpush2.bf16.msra.mxu0 0
    %633 = vmatprep.subr.bf16.mxu0 0
    %634 = vmatpush2.bf16.msra.mxu0 0
    %635 = vmatprep.mubr.bf16.mxu0 0
    %636 = vmatmul.mubr.bf16.gmra.mxu0 %v601
    %v637 = vpop.f32.mrf.mxu0
    %v638 = vadd.f32 0.0, %v637
    %v639 = vpop.f32.mrf.mxu0
    %v640 = vpop.f32.mrf.mxu0
    %v641 = vpop.f32.mrf.mxu0
    %642 = vdwg.mxu0
    %v643 = vadd.f32 %v264, %v638
    %v644 = vxor.u32 %v643, 2147483648
    %v645 = vmul.f32 %v644, 1.442695
    %v646 = vpow.pop %v645
    %v647 = vadd.f32 %v646, 1.0
    %v648 = vrcp.pop %v647
    %v649 = vmul.f32 1.0, %v648
    %v650 = vadd.f32 %v638, %v352
    %652 = vrot.lane.b32.xlu0 %v650, 64
    %v653 = vpop.permute.xlu0 %652
    %v655 = vmul.f32 %v649, %v653
    %657 = vrot.lane.b32.xlu0 %v655, 64
    %v658 = vpop.permute.xlu0 %657
    %v660 = vadd.f32 %v264, %v658
    %v661 = vtanh.pop %v660
    %v662 = vsub.f32 1.0, %v649
    %664 = vrot.lane.b32.xlu0 %v661, 96
    %v665 = vpop.permute.xlu0 %664
    %v667 = vmul.f32 %v662, %v665
    %v668 = vmul.f32 %v649, %v595
    %v669 = vadd.f32 %v667, %v668
    %v670 = vpack.c.bf16 %v669, %v669
    %672 = vrot.lane.b32.xlu0 %v670, 96
    %v673 = vpop.permute.xlu0 %672
    %v675 = vsel %vm295, %v673, 0
    %677 = vmatprep.subr.bf16.mxu0 0
    %678 = vmatpush1.bf16.msra.mxu0 0
    %679 = vmatprep.subr.bf16.mxu0 0
    %680 = vmatpush1.bf16.msra.mxu0 0
    %681 = vmatprep.subr.bf16.mxu0 0
    %682 = vmatpush1.bf16.msra.mxu0 0
    %683 = vmatprep.subr.bf16.mxu0 0
    %684 = vmatpush1.bf16.msra.mxu0 0
    %685 = vmatprep.subr.bf16.mxu0 0
    %686 = vmatpush1.bf16.msra.mxu0 0
    %687 = vmatprep.subr.bf16.mxu0 0
    %688 = vmatpush1.bf16.msra.mxu0 0
    %689 = vmatprep.subr.bf16.mxu0 0
    %690 = vmatpush1.bf16.msra.mxu0 %v292
    %691 = vmatprep.subr.bf16.mxu0 0
    %692 = vmatpush1.bf16.msra.mxu0 %v291
    %693 = vmatprep.subr.bf16.mxu0 0
    %694 = vmatpush2.bf16.msra.mxu0 0
    %695 = vmatprep.subr.bf16.mxu0 0
    %696 = vmatpush2.bf16.msra.mxu0 0
    %697 = vmatprep.subr.bf16.mxu0 0
    %698 = vmatpush2.bf16.msra.mxu0 0
    %699 = vmatprep.subr.bf16.mxu0 0
    %700 = vmatpush2.bf16.msra.mxu0 0
    %701 = vmatprep.subr.bf16.mxu0 0
    %702 = vmatpush2.bf16.msra.mxu0 0
    %703 = vmatprep.subr.bf16.mxu0 0
    %704 = vmatpush2.bf16.msra.mxu0 0
    %705 = vmatprep.subr.bf16.mxu0 0
    %706 = vmatpush2.bf16.msra.mxu0 0
    %707 = vmatprep.subr.bf16.mxu0 0
    %708 = vmatpush2.bf16.msra.mxu0 0
    %709 = vmatprep.mubr.bf16.mxu0 0
    %710 = vmatmul.mubr.bf16.gmra.mxu0 %v675
    %v711 = vpop.f32.mrf.mxu0
    %v712 = vadd.f32 0.0, %v711
    %v713 = vpop.f32.mrf.mxu0
    %v714 = vpop.f32.mrf.mxu0
    %v715 = vpop.f32.mrf.mxu0
    %716 = vdwg.mxu0
    %v717 = vadd.f32 %v267, %v712
    %v718 = vxor.u32 %v717, 2147483648
    %v719 = vmul.f32 %v718, 1.442695
    %v720 = vpow.pop %v719
    %v721 = vadd.f32 %v720, 1.0
    %v722 = vrcp.pop %v721
    %v723 = vmul.f32 1.0, %v722
    %v724 = vadd.f32 %v712, %v352
    %726 = vrot.lane.b32.xlu0 %v724, 64
    %v727 = vpop.permute.xlu0 %726
    %v729 = vmul.f32 %v723, %v727
    %731 = vrot.lane.b32.xlu0 %v729, 64
    %v732 = vpop.permute.xlu0 %731
    %v734 = vadd.f32 %v267, %v732
    %v735 = vtanh.pop %v734
    %v736 = vsub.f32 1.0, %v723
    %738 = vrot.lane.b32.xlu0 %v735, 96
    %v739 = vpop.permute.xlu0 %738
    %v741 = vmul.f32 %v736, %v739
    %v742 = vmul.f32 %v723, %v669
    %v743 = vadd.f32 %v741, %v742
    %v744 = vpack.c.bf16 %v743, %v743
    %746 = vrot.lane.b32.xlu0 %v744, 96
    %v747 = vpop.permute.xlu0 %746
    %v749 = vsel %vm295, %v747, 0
    %751 = vmatprep.subr.bf16.mxu0 0
    %752 = vmatpush1.bf16.msra.mxu0 0
    %753 = vmatprep.subr.bf16.mxu0 0
    %754 = vmatpush1.bf16.msra.mxu0 0
    %755 = vmatprep.subr.bf16.mxu0 0
    %756 = vmatpush1.bf16.msra.mxu0 0
    %757 = vmatprep.subr.bf16.mxu0 0
    %758 = vmatpush1.bf16.msra.mxu0 0
    %759 = vmatprep.subr.bf16.mxu0 0
    %760 = vmatpush1.bf16.msra.mxu0 0
    %761 = vmatprep.subr.bf16.mxu0 0
    %762 = vmatpush1.bf16.msra.mxu0 0
    %763 = vmatprep.subr.bf16.mxu0 0
    %764 = vmatpush1.bf16.msra.mxu0 %v292
    %765 = vmatprep.subr.bf16.mxu0 0
    %766 = vmatpush1.bf16.msra.mxu0 %v291
    %767 = vmatprep.subr.bf16.mxu0 0
    %768 = vmatpush2.bf16.msra.mxu0 0
    %769 = vmatprep.subr.bf16.mxu0 0
    %770 = vmatpush2.bf16.msra.mxu0 0
    %771 = vmatprep.subr.bf16.mxu0 0
    %772 = vmatpush2.bf16.msra.mxu0 0
    %773 = vmatprep.subr.bf16.mxu0 0
    %774 = vmatpush2.bf16.msra.mxu0 0
    %775 = vmatprep.subr.bf16.mxu0 0
    %776 = vmatpush2.bf16.msra.mxu0 0
    %777 = vmatprep.subr.bf16.mxu0 0
    %778 = vmatpush2.bf16.msra.mxu0 0
    %779 = vmatprep.subr.bf16.mxu0 0
    %780 = vmatpush2.bf16.msra.mxu0 0
    %781 = vmatprep.subr.bf16.mxu0 0
    %782 = vmatpush2.bf16.msra.mxu0 0
    %783 = vmatprep.mubr.bf16.mxu0 0
    %784 = vmatmul.mubr.bf16.gmra.mxu0 %v749
    %v785 = vpop.f32.mrf.mxu0
    %v786 = vadd.f32 0.0, %v785
    %v787 = vpop.f32.mrf.mxu0
    %v788 = vpop.f32.mrf.mxu0
    %v789 = vpop.f32.mrf.mxu0
    %790 = vdwg.mxu0
    %v791 = vadd.f32 %v272, %v786
    %v792 = vxor.u32 %v791, 2147483648
    %v793 = vmul.f32 %v792, 1.442695
    %v794 = vpow.pop %v793
    %v795 = vadd.f32 %v794, 1.0
    %v796 = vrcp.pop %v795
    %v797 = vmul.f32 1.0, %v796
    %v798 = vadd.f32 %v786, %v352
    %800 = vrot.lane.b32.xlu0 %v798, 64
    %v801 = vpop.permute.xlu0 %800
    %v803 = vmul.f32 %v797, %v801
    %805 = vrot.lane.b32.xlu0 %v803, 64
    %v806 = vpop.permute.xlu0 %805
    %v808 = vadd.f32 %v272, %v806
    %v809 = vtanh.pop %v808
    %v810 = vsub.f32 1.0, %v797
    %812 = vrot.lane.b32.xlu0 %v809, 96
    %v813 = vpop.permute.xlu0 %812
    %v815 = vmul.f32 %v810, %v813
    %v816 = vmul.f32 %v797, %v743
    %v817 = vadd.f32 %v815, %v816
    %v818 = vpack.c.bf16 %v817, %v817
    %820 = vrot.lane.b32.xlu0 %v818, 96
    %v821 = vpop.permute.xlu0 %820
    %v823 = vsel %vm295, %v821, 0
    %825 = vmatprep.subr.bf16.mxu0 0
    %826 = vmatpush1.bf16.msra.mxu0 0
    %827 = vmatprep.subr.bf16.mxu0 0
    %828 = vmatpush1.bf16.msra.mxu0 0
    %829 = vmatprep.subr.bf16.mxu0 0
    %830 = vmatpush1.bf16.msra.mxu0 0
    %831 = vmatprep.subr.bf16.mxu0 0
    %832 = vmatpush1.bf16.msra.mxu0 0
    %833 = vmatprep.subr.bf16.mxu0 0
    %834 = vmatpush1.bf16.msra.mxu0 0
    %835 = vmatprep.subr.bf16.mxu0 0
    %836 = vmatpush1.bf16.msra.mxu0 0
    %837 = vmatprep.subr.bf16.mxu0 0
    %838 = vmatpush1.bf16.msra.mxu0 %v292
    %839 = vmatprep.subr.bf16.mxu0 0
    %840 = vmatpush1.bf16.msra.mxu0 %v291
    %841 = vmatprep.subr.bf16.mxu0 0
    %842 = vmatpush2.bf16.msra.mxu0 0
    %843 = vmatprep.subr.bf16.mxu0 0
    %844 = vmatpush2.bf16.msra.mxu0 0
    %845 = vmatprep.subr.bf16.mxu0 0
    %846 = vmatpush2.bf16.msra.mxu0 0
    %847 = vmatprep.subr.bf16.mxu0 0
    %848 = vmatpush2.bf16.msra.mxu0 0
    %849 = vmatprep.subr.bf16.mxu0 0
    %850 = vmatpush2.bf16.msra.mxu0 0
    %851 = vmatprep.subr.bf16.mxu0 0
    %852 = vmatpush2.bf16.msra.mxu0 0
    %853 = vmatprep.subr.bf16.mxu0 0
    %854 = vmatpush2.bf16.msra.mxu0 0
    %855 = vmatprep.subr.bf16.mxu0 0
    %856 = vmatpush2.bf16.msra.mxu0 0
    %857 = vmatprep.mubr.bf16.mxu0 0
    %858 = vmatmul.mubr.bf16.gmra.mxu0 %v823
    %v859 = vpop.f32.mrf.mxu0
    %v860 = vadd.f32 0.0, %v859
    %v861 = vpop.f32.mrf.mxu0
    %v862 = vpop.f32.mrf.mxu0
    %v863 = vpop.f32.mrf.mxu0
    %864 = vdwg.mxu0
    %v865 = vadd.f32 %v275, %v860
    %v866 = vxor.u32 %v865, 2147483648
    %v867 = vmul.f32 %v866, 1.442695
    %v868 = vpow.pop %v867
    %v869 = vadd.f32 %v868, 1.0
    %v870 = vrcp.pop %v869
    %v871 = vmul.f32 1.0, %v870
    %v872 = vadd.f32 %v860, %v352
    %874 = vrot.lane.b32.xlu0 %v872, 64
    %v875 = vpop.permute.xlu0 %874
    %v877 = vmul.f32 %v871, %v875
    %879 = vrot.lane.b32.xlu0 %v877, 64
    %v880 = vpop.permute.xlu0 %879
    %v882 = vadd.f32 %v275, %v880
    %v883 = vtanh.pop %v882
    %v884 = vsub.f32 1.0, %v871
    %886 = vrot.lane.b32.xlu0 %v883, 96
    %v887 = vpop.permute.xlu0 %886
    %v889 = vmul.f32 %v884, %v887
    %v890 = vmul.f32 %v871, %v817
    %v891 = vadd.f32 %v889, %v890
    %900 = vrot.lane.b32.xlu0 %v373, 96
    %v901 = vpop.permute.xlu0 %900
    %902 = vrot.lane.b32.xlu0 %v447, 96
    %v903 = vpop.permute.xlu0 %902
    %904 = vrot.lane.b32.xlu0 %v521, 96
    %v905 = vpop.permute.xlu0 %904
    %906 = vrot.lane.b32.xlu0 %v595, 96
    %v907 = vpop.permute.xlu0 %906
    %908 = vrot.lane.b32.xlu0 %v669, 96
    %v909 = vpop.permute.xlu0 %908
    %910 = vrot.lane.b32.xlu0 %v743, 96
    %v911 = vpop.permute.xlu0 %910
    %912 = vrot.lane.b32.xlu0 %v817, 96
    %v913 = vpop.permute.xlu0 %912
    %914 = vrot.lane.b32.xlu0 %v891, 96
    %v915 = vpop.permute.xlu0 %914
    %v924 = vsel %vm295, %v901, 0.0
    %925 = vadd.xlane.f32.xlu0 %v924
    %v926 = vpop.xlane.xlu0 %925
    %v927 = vsel %vm295, %v903, 0.0
    %928 = vadd.xlane.f32.xlu0 %v927
    %v929 = vpop.xlane.xlu0 %928
    %v930 = vsel %vm295, %v905, 0.0
    %931 = vadd.xlane.f32.xlu0 %v930
    %v932 = vpop.xlane.xlu0 %931
    %v933 = vsel %vm295, %v907, 0.0
    %934 = vadd.xlane.f32.xlu0 %v933
    %v935 = vpop.xlane.xlu0 %934
    %v936 = vsel %vm295, %v909, 0.0
    %937 = vadd.xlane.f32.xlu0 %v936
    %v938 = vpop.xlane.xlu0 %937
    %v939 = vsel %vm295, %v911, 0.0
    %940 = vadd.xlane.f32.xlu0 %v939
    %v941 = vpop.xlane.xlu0 %940
    %v942 = vsel %vm295, %v913, 0.0
    %943 = vadd.xlane.f32.xlu0 %v942
    %v944 = vpop.xlane.xlu0 %943
    %v945 = vsel %vm295, %v915, 0.0
    %946 = vadd.xlane.f32.xlu0 %v945
    %v947 = vpop.xlane.xlu0 %946
    %v948 = vrcp.pop 32.0
    %v949 = vmul.f32 %v926, %v948
    %v950 = vmul.f32 %v929, %v948
    %v951 = vmul.f32 %v932, %v948
    %v952 = vmul.f32 %v935, %v948
    %v953 = vmul.f32 %v938, %v948
    %v954 = vmul.f32 %v941, %v948
    %v955 = vmul.f32 %v944, %v948
    %v956 = vmul.f32 %v947, %v948
    %v957 = vsub.f32 %v373, %v949
    %v958 = vsub.f32 %v447, %v950
    %v959 = vsub.f32 %v521, %v951
    %v960 = vsub.f32 %v595, %v952
    %v961 = vsub.f32 %v669, %v953
    %v962 = vsub.f32 %v743, %v954
    %v963 = vsub.f32 %v817, %v955
    %v964 = vsub.f32 %v891, %v956
    %v965 = vmul.f32 %v957, %v957
    %v966 = vmul.f32 %v958, %v958
    %v967 = vmul.f32 %v959, %v959
    %v968 = vmul.f32 %v960, %v960
    %v969 = vmul.f32 %v961, %v961
    %v970 = vmul.f32 %v962, %v962
    %v971 = vmul.f32 %v963, %v963
    %v972 = vmul.f32 %v964, %v964
    %981 = vrot.lane.b32.xlu0 %v965, 96
    %v982 = vpop.permute.xlu0 %981
    %983 = vrot.lane.b32.xlu0 %v966, 96
    %v984 = vpop.permute.xlu0 %983
    %985 = vrot.lane.b32.xlu0 %v967, 96
    %v986 = vpop.permute.xlu0 %985
    %987 = vrot.lane.b32.xlu0 %v968, 96
    %v988 = vpop.permute.xlu0 %987
    %989 = vrot.lane.b32.xlu0 %v969, 96
    %v990 = vpop.permute.xlu0 %989
    %991 = vrot.lane.b32.xlu0 %v970, 96
    %v992 = vpop.permute.xlu0 %991
    %993 = vrot.lane.b32.xlu0 %v971, 96
    %v994 = vpop.permute.xlu0 %993
    %995 = vrot.lane.b32.xlu0 %v972, 96
    %v996 = vpop.permute.xlu0 %995
    %v1005 = vsel %vm295, %v982, 0.0
    %1006 = vadd.xlane.f32.xlu0 %v1005
    %v1007 = vpop.xlane.xlu0 %1006
    %v1008 = vsel %vm295, %v984, 0.0
    %1009 = vadd.xlane.f32.xlu0 %v1008
    %v1010 = vpop.xlane.xlu0 %1009
    %v1011 = vsel %vm295, %v986, 0.0
    %1012 = vadd.xlane.f32.xlu0 %v1011
    %v1013 = vpop.xlane.xlu0 %1012
    %v1014 = vsel %vm295, %v988, 0.0
    %1015 = vadd.xlane.f32.xlu0 %v1014
    %v1016 = vpop.xlane.xlu0 %1015
    %v1017 = vsel %vm295, %v990, 0.0
    %1018 = vadd.xlane.f32.xlu0 %v1017
    %v1019 = vpop.xlane.xlu0 %1018
    %v1020 = vsel %vm295, %v992, 0.0
    %1021 = vadd.xlane.f32.xlu0 %v1020
    %v1022 = vpop.xlane.xlu0 %1021
    %v1023 = vsel %vm295, %v994, 0.0
    %1024 = vadd.xlane.f32.xlu0 %v1023
    %v1025 = vpop.xlane.xlu0 %1024
    %v1026 = vsel %vm295, %v996, 0.0
    %1027 = vadd.xlane.f32.xlu0 %v1026
    %v1028 = vpop.xlane.xlu0 %1027
    %v1029 = vmul.f32 %v1007, %v948
    %v1030 = vmul.f32 %v1010, %v948
    %v1031 = vmul.f32 %v1013, %v948
    %v1032 = vmul.f32 %v1016, %v948
    %v1033 = vmul.f32 %v1019, %v948
    %v1034 = vmul.f32 %v1022, %v948
    %v1035 = vmul.f32 %v1025, %v948
    %v1036 = vmul.f32 %v1028, %v948
    %v1037 = vadd.f32 %v1029, 1e-05
    %v1038 = vadd.f32 %v1030, 1e-05
    %v1039 = vadd.f32 %v1031, 1e-05
    %v1040 = vadd.f32 %v1032, 1e-05
    %v1041 = vadd.f32 %v1033, 1e-05
    %v1042 = vadd.f32 %v1034, 1e-05
    %v1043 = vadd.f32 %v1035, 1e-05
    %v1044 = vadd.f32 %v1036, 1e-05
    %v1045 = vrsqrt.pop %v1037
    %v1046 = vrsqrt.pop %v1038
    %v1047 = vrsqrt.pop %v1039
    %v1048 = vrsqrt.pop %v1040
    %v1049 = vrsqrt.pop %v1041
    %v1050 = vrsqrt.pop %v1042
    %v1051 = vrsqrt.pop %v1043
    %v1052 = vrsqrt.pop %v1044
    %v1053 = vmul.f32 %v957, %v1045
    %v1054 = vmul.f32 %v958, %v1046
    %v1055 = vmul.f32 %v959, %v1047
    %v1056 = vmul.f32 %v960, %v1048
    %v1057 = vmul.f32 %v961, %v1049
    %v1058 = vmul.f32 %v962, %v1050
    %v1059 = vmul.f32 %v963, %v1051
    %v1060 = vmul.f32 %v964, %v1052
    %v1061 = vld [vmem:[%s7] sm:$0x1]
    %v1063 = vlaneseq
    %v1064 = vshrl.u32 %v1063, 7
    %v1065 = vsub.s32 0, %v1064
    %v1066 = vrot.slane %v1061, %v1065
    %1067 = vrot.lane.b32.xlu0 %v1066, 32
    %v1068 = vpop.permute.xlu0 %1067
    %v1070 = vmul.f32 %v1053, %v1068
    %v1071 = vmul.f32 %v1054, %v1068
    %v1072 = vmul.f32 %v1055, %v1068
    %v1073 = vmul.f32 %v1056, %v1068
    %v1074 = vmul.f32 %v1057, %v1068
    %v1075 = vmul.f32 %v1058, %v1068
    %v1076 = vmul.f32 %v1059, %v1068
    %v1077 = vmul.f32 %v1060, %v1068
    %v1078 = vld [vmem:[%s8] sm:$0x1]
    %v1080 = vlaneseq
    %v1081 = vshrl.u32 %v1080, 7
    %v1082 = vsub.s32 0, %v1081
    %v1083 = vrot.slane %v1078, %v1082
    %1084 = vrot.lane.b32.xlu0 %v1083, 32
    %v1085 = vpop.permute.xlu0 %1084
    %v1087 = vadd.f32 %v1070, %v1085
    %v1088 = vadd.f32 %v1071, %v1085
    %v1089 = vadd.f32 %v1072, %v1085
    %v1090 = vadd.f32 %v1073, %v1085
    %v1091 = vadd.f32 %v1074, %v1085
    %v1092 = vadd.f32 %v1075, %v1085
    %v1093 = vadd.f32 %v1076, %v1085
    %v1094 = vadd.f32 %v1077, %v1085
    %1103 = vrot.lane.b32.xlu0 %v1087, 96
    %v1104 = vpop.permute.xlu0 %1103
    %1105 = vrot.lane.b32.xlu0 %v1088, 96
    %v1106 = vpop.permute.xlu0 %1105
    %1107 = vrot.lane.b32.xlu0 %v1089, 96
    %v1108 = vpop.permute.xlu0 %1107
    %1109 = vrot.lane.b32.xlu0 %v1090, 96
    %v1110 = vpop.permute.xlu0 %1109
    %1111 = vrot.lane.b32.xlu0 %v1091, 96
    %v1112 = vpop.permute.xlu0 %1111
    %1113 = vrot.lane.b32.xlu0 %v1092, 96
    %v1114 = vpop.permute.xlu0 %1113
    %1115 = vrot.lane.b32.xlu0 %v1093, 96
    %v1116 = vpop.permute.xlu0 %1115
    %1117 = vrot.lane.b32.xlu0 %v1094, 96
    %v1118 = vpop.permute.xlu0 %1117
    %1127 = vst.msk [vmem:[#allocation7] sm:$0xff] %vm295, %v1104
    %1128 = vst.msk [vmem:[#allocation7 + $0x8] sm:$0xff] %vm295, %v1106
    %1129 = vst.msk [vmem:[#allocation7 + $0x10] sm:$0xff] %vm295, %v1108
    %1130 = vst.msk [vmem:[#allocation7 + $0x18] sm:$0xff] %vm295, %v1110
    %1131 = vst.msk [vmem:[#allocation7 + $0x20] sm:$0xff] %vm295, %v1112
    %1132 = vst.msk [vmem:[#allocation7 + $0x28] sm:$0xff] %vm295, %v1114
    %1133 = vst.msk [vmem:[#allocation7 + $0x30] sm:$0xff] %vm295, %v1116
    %1134 = vst.msk [vmem:[#allocation7 + $0x38] sm:$0xff] %vm295, %v1118
    // Predicated region
    $region46: #{tpu_custom_call.1} parent=1 // pred_check
      _
    $region47: #{tpu_custom_call.1} parent=1 // pred_check_branch
      %1136 = sbr.rel (0) target = $region49
    $region48: #{tpu_custom_call.1} parent=1 // pred_region
      %s1138 = ssub.s32 1024, 1024
      %1139 = vsyncadd [#allocation4], %s1138
      %s1140 = sshll.u32 [#allocation7], 4
      %s1141 = int_to_ptr.vmem [resolvable:$true] %s1140
      %1146 = dma.vmem_to_hbm [thread:$0]  %s1141, 1024, %s9, [#allocation4], 128, 128, 8
    $region49: #{tpu_custom_call.1} parent=1 // pred_fallthru
      _
    // Predicated region
    $region50: #{tpu_custom_call.1} parent=1 // pred_check
      _
    $region51: #{tpu_custom_call.1} parent=1 // pred_check_branch
      %1148 = sbr.rel (0) target = $region53
    $region52: #{tpu_custom_call.1} parent=1 // pred_region
      %1149 = dma.done [#allocation4], 1024
    $region53: #{tpu_custom_call.1} parent=1 // pred_fallthru
      _
    %1150 = vsyncpa [#allocation3], 1
    %1151 = vsyncpa [#allocation6], 1
    %1152 = vsyncpa [#allocation4], 1

</llo_original>
